<compile_context>
chip_gen: v6e
topology: v6e:2x2x1
jax: 0.10.0
libtpu: 0.0.40
codegen_flags: <defaults>
</compile_context>

<pallas_src>
import jax
import jax.numpy as jnp
from jax.experimental import pallas as pl
from jax.experimental.pallas import tpu as pltpu

# ------------------------- model hyper-parameters -------------------------
IN_CHANNELS = 16
HIDDEN_CHANNELS = 16
OUT_CHANNELS = 8
HEADS = 4
NODES_PER_GRAPH = 16
NUM_GRAPHS = 2
N_NODES = NODES_PER_GRAPH * NUM_GRAPHS            # 32
HF = HEADS * HIDDEN_CHANNELS                      # 64  (per-layer output width)
HN = HEADS * N_NODES                              # 128 (lane-dense attention slab width)
W_AUG_COLS = HF + 2 * HEADS                       # 72  ([xh | s_src | s_dst])
VBD_COLS = HF + HEADS                             # 68  ([head values | denom indicator])
NEG_SLOPE = 0.2

# Row offsets inside the packed bf16 weight slab (all multiples of 16 -> aligned bf16 rows).
_W1_ROW, _W2_ROW, _WL_ROW, _WSLAB_ROWS = 0, 16, 80, 144


# ------------------------------ fused kernel ------------------------------
def _fused_gat_kernel(x_ref, mask_ref, pool_ref, wslab_ref, fslab_ref, out_ref, vbd_ref):
    """One graph-batch per grid step; the whole working set stays resident in VMEM."""
    n, h, f = N_NODES, HEADS, HIDDEN_CHANNELS

    x = x_ref[0]                                                  # (N, IN)   bf16
    mask = mask_ref[0]                                            # (N, H*N)  f32 additive bias
    pool = pool_ref[0]                                            # (G, N)    bf16
    w_aug1 = wslab_ref[_W1_ROW:_W1_ROW + IN_CHANNELS, :]          # (IN, 72)  bf16
    w_aug2 = wslab_ref[_W2_ROW:_W2_ROW + HF, :]                   # (HF, 72)  bf16
    wl = wslab_ref[_WL_ROW:_WL_ROW + HF, :OUT_CHANNELS]           # (HF, 8)   bf16
    b1 = fslab_ref[0:1, :]                                        # (1, HF)   f32
    b2 = fslab_ref[1:2, :]                                        # (1, HF)
    bl = fslab_ref[2:3, :OUT_CHANNELS]                            # (1, 8)

    # (Re)build the static parts of the block-diagonal value matrix every grid step.
    # This is ~17 KB of stores and keeps the scratch valid when the batch grid is
    # sharded across TensorCores ("parallel" on v7x), where a program_id==0 guard
    # would leave the second core's scratch uninitialised.
    vbd_ref[...] = jnp.zeros_like(vbd_ref)
    for hd in range(h):                                           # denominator indicator columns
        vbd_ref[hd * n:(hd + 1) * n, HF + hd:HF + hd + 1] = jnp.ones((n, 1), jnp.bfloat16)

    def gat_layer(x_in_bf16, w_aug, bias, apply_relu):
        # rec 1 + rec 5: one bf16 MXU issue for features + both attention-score projections.
        xh_aug = jnp.dot(x_in_bf16, w_aug, preferred_element_type=jnp.float32)   # (N, 72) f32
        xh = xh_aug[:, :HF]                                       # (N, H*F)
        s_src = xh_aug[:, HF:HF + h]                              # (N, H)
        s_dst = xh_aug[:, HF + h:HF + 2 * h]                      # (N, H)
        s_src_t = jnp.transpose(s_src)                            # (H, N)

        # rec 2: lane-dense (N, H*N) attention-logit slab, heads along the lane axis.
        # e[i, h*N + j] = s_dst[i, h] + s_src[j, h]   (edge j -> i)
        e = jnp.concatenate(
            [s_dst[:, hd:hd + 1] + s_src_t[hd:hd + 1, :] for hd in range(h)], axis=-1)
        e = jnp.where(e > 0, e, NEG_SLOPE * e)                    # LeakyReLU (f32, VPU)
        e = e + mask                                              # non-edges -> ~-1e30
        # Per-row max over ALL heads: a constant shift within every (row, head) group,
        # so the softmax is unchanged; avoids a lane-sparse per-head reduction.
        m = jnp.max(e, axis=-1, keepdims=True)
        p = jnp.exp(e - m)                                        # (N, H*N), masked -> 0

        # rec 3: scatter the per-head value blocks onto the block diagonal of the scratch
        # (off-diagonal blocks and the ones columns were initialised above).
        xh_b = xh.astype(jnp.bfloat16)
        for hd in range(h):
            vbd_ref[hd * n:(hd + 1) * n, hd * f:(hd + 1) * f] = xh_b[:, hd * f:(hd + 1) * f]

        # One K=128 bf16 MXU matmul yields all head outputs AND the per-head softmax
        # denominators (rec 3 + rec 4).
        out_aug = jnp.dot(p.astype(jnp.bfloat16), vbd_ref[...],
                          preferred_element_type=jnp.float32)     # (N, H*F + H) f32
        denom = out_aug[:, HF:HF + h]                             # (N, H)
        inv = pl.reciprocal(denom, approx=True)                   # EUP slot, VALU stays free
        inv_slab = jnp.concatenate(
            [jnp.broadcast_to(inv[:, hd:hd + 1], (n, f)) for hd in range(h)], axis=-1)
        out = out_aug[:, :HF] * inv_slab + bias                   # (N, H*F) f32
        if apply_relu:
            out = jnp.maximum(out, 0.0)
        return out

    h1 = gat_layer(x, w_aug1, b1, apply_relu=True)
    # F.dropout(p=0.3, training=self.training): inference mode => identity.
    # TODO(synk): training-mode dropout (pltpu.prng_random_bits mask) not implemented.
    h2 = gat_layer(h1.astype(jnp.bfloat16), w_aug2, b2, apply_relu=False)

    pooled = jnp.dot(pool, h2.astype(jnp.bfloat16),
                     preferred_element_type=jnp.float32)          # (G, H*F)  global_mean_pool
    logits = jnp.dot(pooled.astype(jnp.bfloat16), wl,
                     preferred_element_type=jnp.float32) + bl     # (G, OUT)
    z = logits - jnp.max(logits, axis=-1, keepdims=True)
    out_ref[0] = z - jnp.log(jnp.sum(jnp.exp(z), axis=-1, keepdims=True))   # log_softmax


# ------------------------------ glue + wrapper ------------------------------
def _att_blockdiag(att, heads, f):
    """[heads, f] attention vector -> [heads*f, heads] block-diagonal matrix."""
    eye = jnp.eye(heads, dtype=att.dtype)
    return (att[:, :, None] * eye[:, None, :]).reshape(heads * f, heads)


def _make_w_aug(w, a_src, a_dst):
    """Fold both attention-score projections into the feature matmul (rec 1)."""
    bd_src = _att_blockdiag(a_src, HEADS, HIDDEN_CHANNELS)
    bd_dst = _att_blockdiag(a_dst, HEADS, HIDDEN_CHANNELS)
    return jnp.concatenate([w, w @ bd_src, w @ bd_dst], axis=1)   # (Fin, H*F + 2H)


def gat_graph_lev_forward(params, x, adj, pool_mat):
    """x: (B, N, Fin) f32; adj[b, dst, src] in {0,1} WITH self-loops; pool_mat: (B, G, N).
    Returns (B, G, OUT) log-probabilities (one graph-batch per grid step)."""
    b_, n, _ = x.shape
    g = pool_mat.shape[1]

    # --- host-side packing (rec 5 + rec 7): one bf16 weight slab + one small f32 slab ---
    w_aug1 = _make_w_aug(params["w1"], params["asrc1"], params["adst1"])
    w_aug2 = _make_w_aug(params["w2"], params["asrc2"], params["adst2"])
    wslab = jnp.zeros((_WSLAB_ROWS, W_AUG_COLS), jnp.bfloat16)
    wslab = wslab.at[_W1_ROW:_W1_ROW + IN_CHANNELS, :].set(w_aug1.astype(jnp.bfloat16))
    wslab = wslab.at[_W2_ROW:_W2_ROW + HF, :].set(w_aug2.astype(jnp.bfloat16))
    wslab = wslab.at[_WL_ROW:_WL_ROW + HF, :OUT_CHANNELS].set(params["wl"].astype(jnp.bfloat16))

    fslab = jnp.zeros((3, HF), jnp.float32)
    fslab = fslab.at[0, :].set(params["b1"])
    fslab = fslab.at[1, :].set(params["b2"])
    fslab = fslab.at[2, :OUT_CHANNELS].set(params["bl"])

    # rec 2: additive mask pre-tiled across heads along the lane axis -> (B, N, H*N).
    # NOTE: relies on self-loops in adj (a fully masked row would give uniform attention).
    mask_slab = jnp.tile((1.0 - adj) * jnp.float32(-1e30), (1, 1, HEADS))

    x_b = x.astype(jnp.bfloat16)
    pool_b = pool_mat.astype(jnp.bfloat16)
    inputs = (x_b, mask_slab, pool_b, wslab, fslab)

    macs = b_ * (n * IN_CHANNELS * W_AUG_COLS + n * HF * W_AUG_COLS
                 + 2 * n * HN * VBD_COLS + g * n * HF + g * HF * OUT_CHANNELS)
    transcendentals = b_ * (2 * n * HN + 2 * n * HEADS + g * OUT_CHANNELS + g)
    bytes_accessed = int(sum(a.size * a.dtype.itemsize for a in inputs)
                         + b_ * g * OUT_CHANNELS * 4)

    return pl.pallas_call(
        _fused_gat_kernel,
        out_shape=jax.ShapeDtypeStruct((b_, g, OUT_CHANNELS), jnp.float32),
        grid=(b_,),                                               # rec 8: one graph-batch / step
        in_specs=[
            pl.BlockSpec((1, n, IN_CHANNELS), lambda b: (b, 0, 0)),
            pl.BlockSpec((1, n, HN), lambda b: (b, 0, 0)),
            pl.BlockSpec((1, g, n), lambda b: (b, 0, 0)),
            pl.BlockSpec((_WSLAB_ROWS, W_AUG_COLS), lambda b: (0, 0)),   # shared weights
            pl.BlockSpec((3, HF), lambda b: (0, 0)),                      # shared biases
        ],
        out_specs=pl.BlockSpec((1, g, OUT_CHANNELS), lambda b: (b, 0, 0)),
        scratch_shapes=[pltpu.VMEM((HN, VBD_COLS), jnp.bfloat16)],        # block-diag value matrix
        compiler_params=pltpu.CompilerParams(
            dimension_semantics=("parallel",)),                   # rec 9: both TCs on v7x
        cost_estimate=pl.CostEstimate(flops=2 * macs,
                                      transcendentals=transcendentals,
                                      bytes_accessed=bytes_accessed),
    )(*inputs)


# ------------------------------ pure-JAX reference ------------------------------
def _gat_conv_ref(x, adj, w, att_src, att_dst, bias, heads, f, negative_slope=0.2):
    n = x.shape[0]
    xh = (x @ w).reshape(n, heads, f)
    s_src = (xh * att_src.reshape(1, heads, f)).sum(-1)           # [N, H]
    s_dst = (xh * att_dst.reshape(1, heads, f)).sum(-1)           # [N, H]
    e = s_dst[:, None, :] + s_src[None, :, :]                     # [dst, src, H]
    e = jnp.where(e > 0, e, negative_slope * e)
    mask = adj[:, :, None] > 0
    e = jnp.where(mask, e, -1e30)
    e = e - e.max(axis=1, keepdims=True)
    p = jnp.where(mask, jnp.exp(e), 0.0)
    att = p / p.sum(axis=1, keepdims=True)
    out = jnp.einsum("ijh,jhf->ihf", att, xh)
    return out.reshape(n, heads * f) + bias


def _forward_ref(params, x, adj, pool_mat):
    h = _gat_conv_ref(x, adj, params["w1"], params["asrc1"], params["adst1"],
                      params["b1"], HEADS, HIDDEN_CHANNELS)
    h = jnp.maximum(h, 0.0)
    h = _gat_conv_ref(h, adj, params["w2"], params["asrc2"], params["adst2"],
                      params["b2"], HEADS, HIDDEN_CHANNELS)
    pooled = pool_mat @ h
    logits = pooled @ params["wl"] + params["bl"]
    return logits - jax.scipy.special.logsumexp(logits, axis=-1, keepdims=True)


# ------------------------------ graph glue helpers ------------------------------
def build_adj(edge_index, n):
    """adj[dst, src] = 1 for each edge src->dst, plus self-loops (GATConv default)."""
    adj = jnp.zeros((n, n), jnp.float32)
    src, dst = edge_index[0], edge_index[1]
    adj = adj.at[dst, src].set(1.0)
    idx = jnp.arange(n)
    adj = adj.at[idx, idx].set(1.0)
    return adj


def build_pool_matrix(batch, num_graphs):
    onehot = (batch[None, :] == jnp.arange(num_graphs)[:, None]).astype(jnp.float32)
    counts = onehot.sum(axis=1, keepdims=True)
    return onehot / jnp.maximum(counts, 1.0)


def init_params(key):
    d1_in, d1_out = IN_CHANNELS, HEADS * HIDDEN_CHANNELS
    d2_in, d2_out = HEADS * HIDDEN_CHANNELS, HEADS * HIDDEN_CHANNELS
    ks = jax.random.split(key, 10)
    s = lambda fan_in: 1.0 / jnp.sqrt(jnp.float32(fan_in))
    return {
        "w1": jax.random.normal(ks[0], (d1_in, d1_out), jnp.float32) * s(d1_in),
        "asrc1": jax.random.normal(ks[1], (HEADS, HIDDEN_CHANNELS), jnp.float32) * s(HIDDEN_CHANNELS),
        "adst1": jax.random.normal(ks[2], (HEADS, HIDDEN_CHANNELS), jnp.float32) * s(HIDDEN_CHANNELS),
        "b1": jax.random.normal(ks[3], (d1_out,), jnp.float32) * 0.01,
        "w2": jax.random.normal(ks[4], (d2_in, d2_out), jnp.float32) * s(d2_in),
        "asrc2": jax.random.normal(ks[5], (HEADS, HIDDEN_CHANNELS), jnp.float32) * s(HIDDEN_CHANNELS),
        "adst2": jax.random.normal(ks[6], (HEADS, HIDDEN_CHANNELS), jnp.float32) * s(HIDDEN_CHANNELS),
        "b2": jax.random.normal(ks[7], (d2_out,), jnp.float32) * 0.01,
        "wl": jax.random.normal(ks[8], (HEADS * HIDDEN_CHANNELS, OUT_CHANNELS), jnp.float32) * s(d2_out),
        "bl": jax.random.normal(ks[9], (OUT_CHANNELS,), jnp.float32) * 0.01,
    }


if __name__ == "__main__":
    key = jax.random.PRNGKey(0)
    k_x, k_p = jax.random.split(key)

    # Deterministic graph: 2 graphs of 16 nodes each, bidirectional ring per graph.
    edges = []
    for gi in range(NUM_GRAPHS):
        off = gi * NODES_PER_GRAPH
        for i in range(NODES_PER_GRAPH):
            j = (i + 1) % NODES_PER_GRAPH
            edges.append((off + i, off + j))
            edges.append((off + j, off + i))
    edge_index = jnp.array(edges, dtype=jnp.int32).T              # [2, E]
    batch = jnp.repeat(jnp.arange(NUM_GRAPHS, dtype=jnp.int32), NODES_PER_GRAPH)

    adj_1 = build_adj(edge_index, N_NODES)                        # (N, N) incl. self-loops
    pool_1 = build_pool_matrix(batch, NUM_GRAPHS)                 # (G, N)

    BATCHES = 2                                                   # graph-batches on the grid axis
    x = jax.random.normal(k_x, (BATCHES, N_NODES, IN_CHANNELS), jnp.float32)
    adj = jnp.broadcast_to(adj_1, (BATCHES, N_NODES, N_NODES))
    pool_mat = jnp.broadcast_to(pool_1, (BATCHES, NUM_GRAPHS, N_NODES))
    params = init_params(k_p)

    out = gat_graph_lev_forward(params, x, adj, pool_mat)
    out = jax.block_until_ready(out)

    ref = jax.vmap(lambda xb, ab, pb: _forward_ref(params, xb, ab, pb))(x, adj, pool_mat)
    assert out.shape == (BATCHES, NUM_GRAPHS, OUT_CHANNELS)
    # bf16 MXU inputs (per perf review) + approx reciprocal -> compare slightly looser
    # than a pure-f32 kernel would need; still far below any real signal in the output.
    assert jnp.allclose(out, ref, rtol=1e-2, atol=1e-2), "mismatch vs JAX reference"

    print("KERNEL_OK")
</pallas_src>

<mosaic_0001>
module attributes {stable_mosaic.version = 11 : i64} {
  func.func @_fused_gat_kernel(%arg0: i32, %arg1: memref<1x32x16xbf16, #tpu.memory_space<vmem>>, %arg2: memref<1x32x128xf32, #tpu.memory_space<vmem>>, %arg3: memref<1x2x32xbf16, #tpu.memory_space<vmem>>, %arg4: memref<144x72xbf16, #tpu.memory_space<vmem>>, %arg5: memref<3x64xf32, #tpu.memory_space<vmem>>, %arg6: memref<1x2x8xf32, #tpu.memory_space<vmem>>, %arg7: memref<128x68xbf16, #tpu.memory_space<vmem>>) attributes {dimension_semantics = [#tpu.dimension_semantics<parallel>], iteration_bounds = array<i64: 2>, scalar_prefetch = 0 : i64, scratch_operands = 1 : i64, tpu.core_type = #tpu.core_type<tc>, window_params = [{transform_indices = @transform_0, window_bounds = array<i64: 1, 32, 16>}, {transform_indices = @transform_1, window_bounds = array<i64: 1, 32, 128>}, {transform_indices = @transform_2, window_bounds = array<i64: 1, 2, 32>}, {pipeline_mode = #tpu.pipeline_mode<synchronous>, transform_indices = @transform_3, window_bounds = array<i64: 144, 72>}, {pipeline_mode = #tpu.pipeline_mode<synchronous>, transform_indices = @transform_4, window_bounds = array<i64: 3, 64>}, {transform_indices = @transform_5, window_bounds = array<i64: 1, 2, 8>}]} {
    %c0 = arith.constant 0 : index
    %c0_0 = arith.constant 0 : index
    %c0_1 = arith.constant 0 : index
    %0 = vector.load %arg1[%c0, %c0_0, %c0_1] : memref<1x32x16xbf16, #tpu.memory_space<vmem>>, vector<1x32x16xbf16>
    %1 = vector.shape_cast %0 : vector<1x32x16xbf16> to vector<32x16xbf16>
    %c0_2 = arith.constant 0 : index
    %c0_3 = arith.constant 0 : index
    %c0_4 = arith.constant 0 : index
    %2 = vector.load %arg2[%c0_2, %c0_3, %c0_4] : memref<1x32x128xf32, #tpu.memory_space<vmem>>, vector<1x32x128xf32>
    %3 = vector.shape_cast %2 : vector<1x32x128xf32> to vector<32x128xf32>
    %c0_5 = arith.constant 0 : index
    %c0_6 = arith.constant 0 : index
    %c0_7 = arith.constant 0 : index
    %4 = vector.load %arg3[%c0_5, %c0_6, %c0_7] : memref<1x2x32xbf16, #tpu.memory_space<vmem>>, vector<1x2x32xbf16>
    %5 = vector.shape_cast %4 : vector<1x2x32xbf16> to vector<2x32xbf16>
    %c0_8 = arith.constant 0 : index
    %c0_9 = arith.constant 0 : index
    %6 = vector.load %arg4[%c0_8, %c0_9] : memref<144x72xbf16, #tpu.memory_space<vmem>>, vector<16x72xbf16>
    %c16 = arith.constant 16 : index
    %c0_10 = arith.constant 0 : index
    %7 = vector.load %arg4[%c16, %c0_10] : memref<144x72xbf16, #tpu.memory_space<vmem>>, vector<64x72xbf16>
    %c80 = arith.constant 80 : index
    %c0_11 = arith.constant 0 : index
    %8 = vector.load %arg4[%c80, %c0_11] : memref<144x72xbf16, #tpu.memory_space<vmem>>, vector<64x8xbf16>
    %c0_12 = arith.constant 0 : index
    %c0_13 = arith.constant 0 : index
    %9 = vector.load %arg5[%c0_12, %c0_13] : memref<3x64xf32, #tpu.memory_space<vmem>>, vector<1x64xf32>
    %c1 = arith.constant 1 : index
    %c0_14 = arith.constant 0 : index
    %10 = vector.load %arg5[%c1, %c0_14] : memref<3x64xf32, #tpu.memory_space<vmem>>, vector<1x64xf32>
    %c2 = arith.constant 2 : index
    %c0_15 = arith.constant 0 : index
    %11 = vector.load %arg5[%c2, %c0_15] : memref<3x64xf32, #tpu.memory_space<vmem>>, vector<1x8xf32>
    %cst = arith.constant 0.000000e+00 : bf16
    %12 = vector.broadcast %cst : bf16 to vector<128x68xbf16>
    %c0_16 = arith.constant 0 : index
    %c0_17 = arith.constant 0 : index
    %13 = vector.load %arg7[%c0_16, %c0_17] : memref<128x68xbf16, #tpu.memory_space<vmem>>, vector<128x68xbf16>
    tpu.vector_store %arg7[%c0_16, %c0_17], %12 {strides = array<i32>} : memref<128x68xbf16, #tpu.memory_space<vmem>>, vector<128x68xbf16>,
    %cst_18 = arith.constant 1.000000e+00 : bf16
    %14 = vector.broadcast %cst_18 : bf16 to vector<32x1xbf16>
    %c0_19 = arith.constant 0 : index
    %c64 = arith.constant 64 : index
    %15 = vector.load %arg7[%c0_19, %c64] : memref<128x68xbf16, #tpu.memory_space<vmem>>, vector<32x1xbf16>
    tpu.vector_store %arg7[%c0_19, %c64], %14 {strides = array<i32>} : memref<128x68xbf16, #tpu.memory_space<vmem>>, vector<32x1xbf16>,
    %cst_20 = arith.constant 1.000000e+00 : bf16
    %16 = vector.broadcast %cst_20 : bf16 to vector<32x1xbf16>
    %c32 = arith.constant 32 : index
    %c65 = arith.constant 65 : index
    %17 = vector.load %arg7[%c32, %c65] : memref<128x68xbf16, #tpu.memory_space<vmem>>, vector<32x1xbf16>
    tpu.vector_store %arg7[%c32, %c65], %16 {strides = array<i32>} : memref<128x68xbf16, #tpu.memory_space<vmem>>, vector<32x1xbf16>,
    %cst_21 = arith.constant 1.000000e+00 : bf16
    %18 = vector.broadcast %cst_21 : bf16 to vector<32x1xbf16>
    %c64_22 = arith.constant 64 : index
    %c66 = arith.constant 66 : index
    %19 = vector.load %arg7[%c64_22, %c66] : memref<128x68xbf16, #tpu.memory_space<vmem>>, vector<32x1xbf16>
    tpu.vector_store %arg7[%c64_22, %c66], %18 {strides = array<i32>} : memref<128x68xbf16, #tpu.memory_space<vmem>>, vector<32x1xbf16>,
    %cst_23 = arith.constant 1.000000e+00 : bf16
    %20 = vector.broadcast %cst_23 : bf16 to vector<32x1xbf16>
    %c96 = arith.constant 96 : index
    %c67 = arith.constant 67 : index
    %21 = vector.load %arg7[%c96, %c67] : memref<128x68xbf16, #tpu.memory_space<vmem>>, vector<32x1xbf16>
    tpu.vector_store %arg7[%c96, %c67], %20 {strides = array<i32>} : memref<128x68xbf16, #tpu.memory_space<vmem>>, vector<32x1xbf16>,
    %cst_24 = arith.constant dense<0.000000e+00> : vector<32x72xf32>
    %22 = tpu.matmul %1, %6, %cst_24 {dimension_numbers = #tpu.dot_dimension_numbers<[1], [0], [0], [1], [0, 0, 1, 1], [], []>} : vector<32x16xbf16>, vector<16x72xbf16>, vector<32x72xf32> -> vector<32x72xf32>
    %23 = vector.extract_strided_slice %22 {offsets = [0, 0], sizes = [32, 64], strides = [1, 1]} : vector<32x72xf32> to vector<32x64xf32>
    %24 = vector.extract_strided_slice %22 {offsets = [0, 64], sizes = [32, 4], strides = [1, 1]} : vector<32x72xf32> to vector<32x4xf32>
    %25 = vector.extract_strided_slice %22 {offsets = [0, 68], sizes = [32, 4], strides = [1, 1]} : vector<32x72xf32> to vector<32x4xf32>
    %26 = tpu.transpose %24, [1, 0] : vector<32x4xf32> -> vector<4x32xf32>
    %27 = vector.extract_strided_slice %25 {offsets = [0, 0], sizes = [32, 1], strides = [1, 1]} : vector<32x4xf32> to vector<32x1xf32>
    %28 = vector.extract_strided_slice %26 {offsets = [0, 0], sizes = [1, 32], strides = [1, 1]} : vector<4x32xf32> to vector<1x32xf32>
    %29 = vector.broadcast %27 : vector<32x1xf32> to vector<32x32xf32>
    %30 = vector.broadcast %28 : vector<1x32xf32> to vector<32x32xf32>
    %31 = arith.addf %29, %30 : vector<32x32xf32>
    %32 = vector.extract_strided_slice %25 {offsets = [0, 1], sizes = [32, 1], strides = [1, 1]} : vector<32x4xf32> to vector<32x1xf32>
    %33 = vector.extract_strided_slice %26 {offsets = [1, 0], sizes = [1, 32], strides = [1, 1]} : vector<4x32xf32> to vector<1x32xf32>
    %34 = vector.broadcast %32 : vector<32x1xf32> to vector<32x32xf32>
    %35 = vector.broadcast %33 : vector<1x32xf32> to vector<32x32xf32>
    %36 = arith.addf %34, %35 : vector<32x32xf32>
    %37 = vector.extract_strided_slice %25 {offsets = [0, 2], sizes = [32, 1], strides = [1, 1]} : vector<32x4xf32> to vector<32x1xf32>
    %38 = vector.extract_strided_slice %26 {offsets = [2, 0], sizes = [1, 32], strides = [1, 1]} : vector<4x32xf32> to vector<1x32xf32>
    %39 = vector.broadcast %37 : vector<32x1xf32> to vector<32x32xf32>
    %40 = vector.broadcast %38 : vector<1x32xf32> to vector<32x32xf32>
    %41 = arith.addf %39, %40 : vector<32x32xf32>
    %42 = vector.extract_strided_slice %25 {offsets = [0, 3], sizes = [32, 1], strides = [1, 1]} : vector<32x4xf32> to vector<32x1xf32>
    %43 = vector.extract_strided_slice %26 {offsets = [3, 0], sizes = [1, 32], strides = [1, 1]} : vector<4x32xf32> to vector<1x32xf32>
    %44 = vector.broadcast %42 : vector<32x1xf32> to vector<32x32xf32>
    %45 = vector.broadcast %43 : vector<1x32xf32> to vector<32x32xf32>
    %46 = arith.addf %44, %45 : vector<32x32xf32>
    %47 = tpu.concatenate %31, %36, %41, %46 in 1 : vector<32x32xf32>, vector<32x32xf32>, vector<32x32xf32>, vector<32x32xf32> -> vector<32x128xf32>
    %cst_25 = arith.constant 0.000000e+00 : f32
    %48 = vector.broadcast %cst_25 : f32 to vector<32x128xf32>
    %49 = arith.cmpf ogt, %47, %48 : vector<32x128xf32>
    %cst_26 = arith.constant 2.000000e-01 : f32
    %50 = vector.broadcast %cst_26 : f32 to vector<32x128xf32>
    %51 = arith.mulf %50, %47 : vector<32x128xf32>
    %52 = arith.select %49, %47, %51 : vector<32x128xi1>, vector<32x128xf32>
    %53 = arith.addf %52, %3 : vector<32x128xf32>
    %cst_27 = arith.constant dense<0xFF800000> : vector<32xf32>
    %54 = vector.multi_reduction <maximumf>, %53, %cst_27 [1] : vector<32x128xf32> to vector<32xf32>
    %55 = vector.shape_cast %54 : vector<32xf32> to vector<32x1xf32>
    %56 = vector.broadcast %55 : vector<32x1xf32> to vector<32x128xf32>
    %57 = arith.subf %53, %56 : vector<32x128xf32>
    %58 = math.exp %57 : vector<32x128xf32>
    %59 = arith.truncf %23 : vector<32x64xf32> to vector<32x64xbf16>
    %60 = vector.extract_strided_slice %59 {offsets = [0, 0], sizes = [32, 16], strides = [1, 1]} : vector<32x64xbf16> to vector<32x16xbf16>
    %c0_28 = arith.constant 0 : index
    %c0_29 = arith.constant 0 : index
    %61 = vector.load %arg7[%c0_28, %c0_29] : memref<128x68xbf16, #tpu.memory_space<vmem>>, vector<32x16xbf16>
    tpu.vector_store %arg7[%c0_28, %c0_29], %60 {strides = array<i32>} : memref<128x68xbf16, #tpu.memory_space<vmem>>, vector<32x16xbf16>,
    %62 = vector.extract_strided_slice %59 {offsets = [0, 16], sizes = [32, 16], strides = [1, 1]} : vector<32x64xbf16> to vector<32x16xbf16>
    %c32_30 = arith.constant 32 : index
    %c16_31 = arith.constant 16 : index
    %63 = vector.load %arg7[%c32_30, %c16_31] : memref<128x68xbf16, #tpu.memory_space<vmem>>, vector<32x16xbf16>
    tpu.vector_store %arg7[%c32_30, %c16_31], %62 {strides = array<i32>} : memref<128x68xbf16, #tpu.memory_space<vmem>>, vector<32x16xbf16>,
    %64 = vector.extract_strided_slice %59 {offsets = [0, 32], sizes = [32, 16], strides = [1, 1]} : vector<32x64xbf16> to vector<32x16xbf16>
    %c64_32 = arith.constant 64 : index
    %c32_33 = arith.constant 32 : index
    %65 = vector.load %arg7[%c64_32, %c32_33] : memref<128x68xbf16, #tpu.memory_space<vmem>>, vector<32x16xbf16>
    tpu.vector_store %arg7[%c64_32, %c32_33], %64 {strides = array<i32>} : memref<128x68xbf16, #tpu.memory_space<vmem>>, vector<32x16xbf16>,
    %66 = vector.extract_strided_slice %59 {offsets = [0, 48], sizes = [32, 16], strides = [1, 1]} : vector<32x64xbf16> to vector<32x16xbf16>
    %c96_34 = arith.constant 96 : index
    %c48 = arith.constant 48 : index
    %67 = vector.load %arg7[%c96_34, %c48] : memref<128x68xbf16, #tpu.memory_space<vmem>>, vector<32x16xbf16>
    tpu.vector_store %arg7[%c96_34, %c48], %66 {strides = array<i32>} : memref<128x68xbf16, #tpu.memory_space<vmem>>, vector<32x16xbf16>,
    %68 = arith.truncf %58 : vector<32x128xf32> to vector<32x128xbf16>
    %c0_35 = arith.constant 0 : index
    %c0_36 = arith.constant 0 : index
    %69 = vector.load %arg7[%c0_35, %c0_36] : memref<128x68xbf16, #tpu.memory_space<vmem>>, vector<128x68xbf16>
    %cst_37 = arith.constant dense<0.000000e+00> : vector<32x68xf32>
    %70 = tpu.matmul %68, %69, %cst_37 {dimension_numbers = #tpu.dot_dimension_numbers<[1], [0], [0], [1], [0, 0, 1, 1], [], []>} : vector<32x128xbf16>, vector<128x68xbf16>, vector<32x68xf32> -> vector<32x68xf32>
    %71 = vector.extract_strided_slice %70 {offsets = [0, 64], sizes = [32, 4], strides = [1, 1]} : vector<32x68xf32> to vector<32x4xf32>
    %72 = tpu.reciprocal %71 {approx = true} : vector<32x4xf32> -> vector<32x4xf32>
    %73 = vector.extract_strided_slice %72 {offsets = [0, 0], sizes = [32, 1], strides = [1, 1]} : vector<32x4xf32> to vector<32x1xf32>
    %74 = vector.shape_cast %73 : vector<32x1xf32> to vector<32x1xf32>
    %75 = vector.broadcast %74 : vector<32x1xf32> to vector<32x16xf32>
    %76 = vector.extract_strided_slice %72 {offsets = [0, 1], sizes = [32, 1], strides = [1, 1]} : vector<32x4xf32> to vector<32x1xf32>
    %77 = vector.shape_cast %76 : vector<32x1xf32> to vector<32x1xf32>
    %78 = vector.broadcast %77 : vector<32x1xf32> to vector<32x16xf32>
    %79 = vector.extract_strided_slice %72 {offsets = [0, 2], sizes = [32, 1], strides = [1, 1]} : vector<32x4xf32> to vector<32x1xf32>
    %80 = vector.shape_cast %79 : vector<32x1xf32> to vector<32x1xf32>
    %81 = vector.broadcast %80 : vector<32x1xf32> to vector<32x16xf32>
    %82 = vector.extract_strided_slice %72 {offsets = [0, 3], sizes = [32, 1], strides = [1, 1]} : vector<32x4xf32> to vector<32x1xf32>
    %83 = vector.shape_cast %82 : vector<32x1xf32> to vector<32x1xf32>
    %84 = vector.broadcast %83 : vector<32x1xf32> to vector<32x16xf32>
    %85 = tpu.concatenate %75, %78, %81, %84 in 1 : vector<32x16xf32>, vector<32x16xf32>, vector<32x16xf32>, vector<32x16xf32> -> vector<32x64xf32>
    %86 = vector.extract_strided_slice %70 {offsets = [0, 0], sizes = [32, 64], strides = [1, 1]} : vector<32x68xf32> to vector<32x64xf32>
    %87 = arith.mulf %86, %85 : vector<32x64xf32>
    %88 = vector.broadcast %9 : vector<1x64xf32> to vector<32x64xf32>
    %89 = arith.addf %87, %88 : vector<32x64xf32>
    %cst_38 = arith.constant 0.000000e+00 : f32
    %90 = vector.broadcast %cst_38 : f32 to vector<32x64xf32>
    %91 = arith.maximumf %89, %90 : vector<32x64xf32>
    %92 = arith.truncf %91 : vector<32x64xf32> to vector<32x64xbf16>
    %cst_39 = arith.constant dense<0.000000e+00> : vector<32x72xf32>
    %93 = tpu.matmul %92, %7, %cst_39 {dimension_numbers = #tpu.dot_dimension_numbers<[1], [0], [0], [1], [0, 0, 1, 1], [], []>} : vector<32x64xbf16>, vector<64x72xbf16>, vector<32x72xf32> -> vector<32x72xf32>
    %94 = vector.extract_strided_slice %93 {offsets = [0, 0], sizes = [32, 64], strides = [1, 1]} : vector<32x72xf32> to vector<32x64xf32>
    %95 = vector.extract_strided_slice %93 {offsets = [0, 64], sizes = [32, 4], strides = [1, 1]} : vector<32x72xf32> to vector<32x4xf32>
    %96 = vector.extract_strided_slice %93 {offsets = [0, 68], sizes = [32, 4], strides = [1, 1]} : vector<32x72xf32> to vector<32x4xf32>
    %97 = tpu.transpose %95, [1, 0] : vector<32x4xf32> -> vector<4x32xf32>
    %98 = vector.extract_strided_slice %96 {offsets = [0, 0], sizes = [32, 1], strides = [1, 1]} : vector<32x4xf32> to vector<32x1xf32>
    %99 = vector.extract_strided_slice %97 {offsets = [0, 0], sizes = [1, 32], strides = [1, 1]} : vector<4x32xf32> to vector<1x32xf32>
    %100 = vector.broadcast %98 : vector<32x1xf32> to vector<32x32xf32>
    %101 = vector.broadcast %99 : vector<1x32xf32> to vector<32x32xf32>
    %102 = arith.addf %100, %101 : vector<32x32xf32>
    %103 = vector.extract_strided_slice %96 {offsets = [0, 1], sizes = [32, 1], strides = [1, 1]} : vector<32x4xf32> to vector<32x1xf32>
    %104 = vector.extract_strided_slice %97 {offsets = [1, 0], sizes = [1, 32], strides = [1, 1]} : vector<4x32xf32> to vector<1x32xf32>
    %105 = vector.broadcast %103 : vector<32x1xf32> to vector<32x32xf32>
    %106 = vector.broadcast %104 : vector<1x32xf32> to vector<32x32xf32>
    %107 = arith.addf %105, %106 : vector<32x32xf32>
    %108 = vector.extract_strided_slice %96 {offsets = [0, 2], sizes = [32, 1], strides = [1, 1]} : vector<32x4xf32> to vector<32x1xf32>
    %109 = vector.extract_strided_slice %97 {offsets = [2, 0], sizes = [1, 32], strides = [1, 1]} : vector<4x32xf32> to vector<1x32xf32>
    %110 = vector.broadcast %108 : vector<32x1xf32> to vector<32x32xf32>
    %111 = vector.broadcast %109 : vector<1x32xf32> to vector<32x32xf32>
    %112 = arith.addf %110, %111 : vector<32x32xf32>
    %113 = vector.extract_strided_slice %96 {offsets = [0, 3], sizes = [32, 1], strides = [1, 1]} : vector<32x4xf32> to vector<32x1xf32>
    %114 = vector.extract_strided_slice %97 {offsets = [3, 0], sizes = [1, 32], strides = [1, 1]} : vector<4x32xf32> to vector<1x32xf32>
    %115 = vector.broadcast %113 : vector<32x1xf32> to vector<32x32xf32>
    %116 = vector.broadcast %114 : vector<1x32xf32> to vector<32x32xf32>
    %117 = arith.addf %115, %116 : vector<32x32xf32>
    %118 = tpu.concatenate %102, %107, %112, %117 in 1 : vector<32x32xf32>, vector<32x32xf32>, vector<32x32xf32>, vector<32x32xf32> -> vector<32x128xf32>
    %cst_40 = arith.constant 0.000000e+00 : f32
    %119 = vector.broadcast %cst_40 : f32 to vector<32x128xf32>
    %120 = arith.cmpf ogt, %118, %119 : vector<32x128xf32>
    %cst_41 = arith.constant 2.000000e-01 : f32
    %121 = vector.broadcast %cst_41 : f32 to vector<32x128xf32>
    %122 = arith.mulf %121, %118 : vector<32x128xf32>
    %123 = arith.select %120, %118, %122 : vector<32x128xi1>, vector<32x128xf32>
    %124 = arith.addf %123, %3 : vector<32x128xf32>
    %cst_42 = arith.constant dense<0xFF800000> : vector<32xf32>
    %125 = vector.multi_reduction <maximumf>, %124, %cst_42 [1] : vector<32x128xf32> to vector<32xf32>
    %126 = vector.shape_cast %125 : vector<32xf32> to vector<32x1xf32>
    %127 = vector.broadcast %126 : vector<32x1xf32> to vector<32x128xf32>
    %128 = arith.subf %124, %127 : vector<32x128xf32>
    %129 = math.exp %128 : vector<32x128xf32>
    %130 = arith.truncf %94 : vector<32x64xf32> to vector<32x64xbf16>
    %131 = vector.extract_strided_slice %130 {offsets = [0, 0], sizes = [32, 16], strides = [1, 1]} : vector<32x64xbf16> to vector<32x16xbf16>
    %c0_43 = arith.constant 0 : index
    %c0_44 = arith.constant 0 : index
    %132 = vector.load %arg7[%c0_43, %c0_44] : memref<128x68xbf16, #tpu.memory_space<vmem>>, vector<32x16xbf16>
    tpu.vector_store %arg7[%c0_43, %c0_44], %131 {strides = array<i32>} : memref<128x68xbf16, #tpu.memory_space<vmem>>, vector<32x16xbf16>,
    %133 = vector.extract_strided_slice %130 {offsets = [0, 16], sizes = [32, 16], strides = [1, 1]} : vector<32x64xbf16> to vector<32x16xbf16>
    %c32_45 = arith.constant 32 : index
    %c16_46 = arith.constant 16 : index
    %134 = vector.load %arg7[%c32_45, %c16_46] : memref<128x68xbf16, #tpu.memory_space<vmem>>, vector<32x16xbf16>
    tpu.vector_store %arg7[%c32_45, %c16_46], %133 {strides = array<i32>} : memref<128x68xbf16, #tpu.memory_space<vmem>>, vector<32x16xbf16>,
    %135 = vector.extract_strided_slice %130 {offsets = [0, 32], sizes = [32, 16], strides = [1, 1]} : vector<32x64xbf16> to vector<32x16xbf16>
    %c64_47 = arith.constant 64 : index
    %c32_48 = arith.constant 32 : index
    %136 = vector.load %arg7[%c64_47, %c32_48] : memref<128x68xbf16, #tpu.memory_space<vmem>>, vector<32x16xbf16>
    tpu.vector_store %arg7[%c64_47, %c32_48], %135 {strides = array<i32>} : memref<128x68xbf16, #tpu.memory_space<vmem>>, vector<32x16xbf16>,
    %137 = vector.extract_strided_slice %130 {offsets = [0, 48], sizes = [32, 16], strides = [1, 1]} : vector<32x64xbf16> to vector<32x16xbf16>
    %c96_49 = arith.constant 96 : index
    %c48_50 = arith.constant 48 : index
    %138 = vector.load %arg7[%c96_49, %c48_50] : memref<128x68xbf16, #tpu.memory_space<vmem>>, vector<32x16xbf16>
    tpu.vector_store %arg7[%c96_49, %c48_50], %137 {strides = array<i32>} : memref<128x68xbf16, #tpu.memory_space<vmem>>, vector<32x16xbf16>,
    %139 = arith.truncf %129 : vector<32x128xf32> to vector<32x128xbf16>
    %c0_51 = arith.constant 0 : index
    %c0_52 = arith.constant 0 : index
    %140 = vector.load %arg7[%c0_51, %c0_52] : memref<128x68xbf16, #tpu.memory_space<vmem>>, vector<128x68xbf16>
    %cst_53 = arith.constant dense<0.000000e+00> : vector<32x68xf32>
    %141 = tpu.matmul %139, %140, %cst_53 {dimension_numbers = #tpu.dot_dimension_numbers<[1], [0], [0], [1], [0, 0, 1, 1], [], []>} : vector<32x128xbf16>, vector<128x68xbf16>, vector<32x68xf32> -> vector<32x68xf32>
    %142 = vector.extract_strided_slice %141 {offsets = [0, 64], sizes = [32, 4], strides = [1, 1]} : vector<32x68xf32> to vector<32x4xf32>
    %143 = tpu.reciprocal %142 {approx = true} : vector<32x4xf32> -> vector<32x4xf32>
    %144 = vector.extract_strided_slice %143 {offsets = [0, 0], sizes = [32, 1], strides = [1, 1]} : vector<32x4xf32> to vector<32x1xf32>
    %145 = vector.shape_cast %144 : vector<32x1xf32> to vector<32x1xf32>
    %146 = vector.broadcast %145 : vector<32x1xf32> to vector<32x16xf32>
    %147 = vector.extract_strided_slice %143 {offsets = [0, 1], sizes = [32, 1], strides = [1, 1]} : vector<32x4xf32> to vector<32x1xf32>
    %148 = vector.shape_cast %147 : vector<32x1xf32> to vector<32x1xf32>
    %149 = vector.broadcast %148 : vector<32x1xf32> to vector<32x16xf32>
    %150 = vector.extract_strided_slice %143 {offsets = [0, 2], sizes = [32, 1], strides = [1, 1]} : vector<32x4xf32> to vector<32x1xf32>
    %151 = vector.shape_cast %150 : vector<32x1xf32> to vector<32x1xf32>
    %152 = vector.broadcast %151 : vector<32x1xf32> to vector<32x16xf32>
    %153 = vector.extract_strided_slice %143 {offsets = [0, 3], sizes = [32, 1], strides = [1, 1]} : vector<32x4xf32> to vector<32x1xf32>
    %154 = vector.shape_cast %153 : vector<32x1xf32> to vector<32x1xf32>
    %155 = vector.broadcast %154 : vector<32x1xf32> to vector<32x16xf32>
    %156 = tpu.concatenate %146, %149, %152, %155 in 1 : vector<32x16xf32>, vector<32x16xf32>, vector<32x16xf32>, vector<32x16xf32> -> vector<32x64xf32>
    %157 = vector.extract_strided_slice %141 {offsets = [0, 0], sizes = [32, 64], strides = [1, 1]} : vector<32x68xf32> to vector<32x64xf32>
    %158 = arith.mulf %157, %156 : vector<32x64xf32>
    %159 = vector.broadcast %10 : vector<1x64xf32> to vector<32x64xf32>
    %160 = arith.addf %158, %159 : vector<32x64xf32>
    %161 = arith.truncf %160 : vector<32x64xf32> to vector<32x64xbf16>
    %cst_54 = arith.constant dense<0.000000e+00> : vector<2x64xf32>
    %162 = tpu.matmul %5, %161, %cst_54 {dimension_numbers = #tpu.dot_dimension_numbers<[1], [0], [0], [1], [0, 0, 1, 1], [], []>} : vector<2x32xbf16>, vector<32x64xbf16>, vector<2x64xf32> -> vector<2x64xf32>
    %163 = arith.truncf %162 : vector<2x64xf32> to vector<2x64xbf16>
    %cst_55 = arith.constant dense<0.000000e+00> : vector<2x8xf32>
    %164 = tpu.matmul %163, %8, %cst_55 {dimension_numbers = #tpu.dot_dimension_numbers<[1], [0], [0], [1], [0, 0, 1, 1], [], []>} : vector<2x64xbf16>, vector<64x8xbf16>, vector<2x8xf32> -> vector<2x8xf32>
    %165 = vector.broadcast %11 : vector<1x8xf32> to vector<2x8xf32>
    %166 = arith.addf %164, %165 : vector<2x8xf32>
    %cst_56 = arith.constant dense<0xFF800000> : vector<2xf32>
    %167 = vector.multi_reduction <maximumf>, %166, %cst_56 [1] : vector<2x8xf32> to vector<2xf32>
    %168 = vector.shape_cast %167 : vector<2xf32> to vector<2x1xf32>
    %169 = vector.broadcast %168 : vector<2x1xf32> to vector<2x8xf32>
    %170 = arith.subf %166, %169 : vector<2x8xf32>
    %171 = math.exp %170 : vector<2x8xf32>
    %cst_57 = arith.constant dense<0.000000e+00> : vector<2xf32>
    %172 = vector.multi_reduction <add>, %171, %cst_57 [1] : vector<2x8xf32> to vector<2xf32>
    %173 = vector.shape_cast %172 : vector<2xf32> to vector<2x1xf32>
    %174 = math.log %173 : vector<2x1xf32>
    %175 = vector.broadcast %174 : vector<2x1xf32> to vector<2x8xf32>
    %176 = arith.subf %170, %175 : vector<2x8xf32>
    %c0_58 = arith.constant 0 : index
    %c0_59 = arith.constant 0 : index
    %c0_60 = arith.constant 0 : index
    %177 = vector.load %arg6[%c0_58, %c0_59, %c0_60] : memref<1x2x8xf32, #tpu.memory_space<vmem>>, vector<1x2x8xf32>
    %178 = vector.shape_cast %177 : vector<1x2x8xf32> to vector<2x8xf32>
    %179 = vector.shape_cast %176 : vector<2x8xf32> to vector<1x2x8xf32>
    tpu.vector_store %arg6[%c0_58, %c0_59, %c0_60], %179 {strides = array<i32>} : memref<1x2x8xf32, #tpu.memory_space<vmem>>, vector<1x2x8xf32>,
    return
  }
  func.func @transform_0(%arg0: i32) -> (i32, i32, i32) {
    %c0_i32 = arith.constant 0 : i32
    %c0_i32_0 = arith.constant 0 : i32
    %c0_i32_1 = arith.constant 0 : i32
    return %arg0, %c0_i32, %c0_i32_0 : i32, i32, i32
  }
  func.func @transform_1(%arg0: i32) -> (i32, i32, i32) {
    %c0_i32 = arith.constant 0 : i32
    %c0_i32_0 = arith.constant 0 : i32
    %c0_i32_1 = arith.constant 0 : i32
    return %arg0, %c0_i32, %c0_i32_0 : i32, i32, i32
  }
  func.func @transform_2(%arg0: i32) -> (i32, i32, i32) {
    %c0_i32 = arith.constant 0 : i32
    %c0_i32_0 = arith.constant 0 : i32
    %c0_i32_1 = arith.constant 0 : i32
    return %arg0, %c0_i32, %c0_i32_0 : i32, i32, i32
  }
  func.func @transform_3(%arg0: i32) -> (i32, i32) {
    %c0_i32 = arith.constant 0 : i32
    %c0_i32_0 = arith.constant 0 : i32
    %c0_i32_1 = arith.constant 0 : i32
    return %c0_i32, %c0_i32_0 : i32, i32
  }
  func.func @transform_4(%arg0: i32) -> (i32, i32) {
    %c0_i32 = arith.constant 0 : i32
    %c0_i32_0 = arith.constant 0 : i32
    %c0_i32_1 = arith.constant 0 : i32
    return %c0_i32, %c0_i32_0 : i32, i32
  }
  func.func @transform_5(%arg0: i32) -> (i32, i32, i32) {
    %c0_i32 = arith.constant 0 : i32
    %c0_i32_0 = arith.constant 0 : i32
    %c0_i32_1 = arith.constant 0 : i32
    return %arg0, %c0_i32, %c0_i32_0 : i32, i32, i32
  }
}

</mosaic_0001>

<llo_original>
// kernel: tpu_custom_call.1
$region0: #{tpu_custom_call.1}
  #allocation0 [shape = 'u32[]', space=smem, size = 0x4, offset = 0x4, fixed_abs, tag = 'smem constant byte address 0x4 - core index']
  #allocation1 [shape = 'u32[144,128]{1,0:T(1,128)}', space=vmem, size = 0x12000, scoped, tag = 'internal scratch']
  #allocation2 [shape = 'bf16[128,68]{1,0:T(8,128)(2,1)}', space=vmem, size = 0x8000, scoped, tag = 'scratch operand']
  %s0 = inlined_call_operand.vmem [shape: bf16[2,32,16], index: 0, kind: input, shape index: {}]
  %s1 = inlined_call_operand.hbm [shape: f32[2,32,128], index: 1, kind: input, shape index: {}]
  %s2 = inlined_call_operand.vmem [shape: bf16[2,2,32], index: 2, kind: input, shape index: {}]
  %s3 = inlined_call_operand.hbm [shape: bf16[144,72], index: 3, kind: input, shape index: {}]
  %s4 = inlined_call_operand.vmem [shape: f32[3,64], index: 4, kind: input, shape index: {}]
  %s5 = inlined_call_operand.hbm [shape: f32[2,2,8], index: 5, kind: output, shape index: {}]
  %s6 = sld [smem:[#allocation0]]
  $region61: #{tpu_custom_call.1} parent=0
    _
  %s8 = ssub.s32 1, %s6
  %s9 = scalar_select 0, %s8, %s6
  $region1: #{tpu_custom_call.1} parent=0
    #allocation3 [shape = 'u8[32768]{0}', space=vmem, size = 0x8000, scoped, tag = 'input window, operand 1']
    #allocation4 [shape = 's32[2]{0}', space=sflag, size = 0x8, scoped, tag = 'scoped memory for tpu_custom_call.1']
    #allocation5 [shape = 's32[2]{0}', space=sflag, size = 0x8, scoped, tag = 'scoped memory for tpu_custom_call.1']
    #allocation6 [shape = 'u8[36864]{0}', space=vmem, size = 0x9000, scoped, tag = 'input window, operand 3, single buffered']
    #allocation7 [shape = 's32[1]{0}', space=sflag, size = 0x4, scoped, tag = 'scoped memory for tpu_custom_call.1']
    #allocation8 [shape = 'u8[2048]{0}', space=vmem, size = 0x800, scoped, tag = 'output window, operand 0']
    %10 = vsyncpa [#allocation4], 0
    %s11 = scalar_lea.sflag [#allocation4], 1
    %12 = vsyncpa %s11, 0
    %13 = vsyncpa [#allocation7], 0
    %14 = vsyncpa [#allocation5], 0
    %s15 = scalar_lea.sflag [#allocation5], 1
    %16 = vsyncpa %s15, 0
    loop: start=0, step=1, limit=4
    $region2: #{tpu_custom_call.1} parent=1 // loop_pre_header
      _
    $region3: #{tpu_custom_call.1} parent=1 // loop_header
      %s18 = sphi 0, %s22
      %p19 = scmp.ge.s32.totalorder %s18, 4
      %s28 = sphi 0, %s30
      %s31 = sphi 0, %s28
      %s32 = sphi 0, %s31
      %s48 = sphi 0, %s32
      %s54 = sphi 0, %s56
      %s57 = sphi 0, %s54
      %s58 = sphi 0, %s57
      %s74 = sphi 0, %s58
      %s80 = sphi 0, %s82
      %s83 = sphi 0, %s80
      %s84 = sphi 0, %s83
      %s100 = sphi 0, %s84
      %s104 = sphi 0, %s104
      %s106 = sphi 0, %s104
      %s107 = sphi 0, %s106
      %s121 = sphi 0, %s107
      %s125 = sphi 0, %s125
      %s127 = sphi 0, %s125
      %s128 = sphi 0, %s127
      %s142 = sphi 0, %s128
      %s148 = sphi 0, %s150
      %s151 = sphi 0, %s148
      %s152 = sphi 0, %s151
      %s168 = sphi 0, %s152
    $region4: #{tpu_custom_call.1} parent=1 // loop_header_branch
      %21 = sbr.rel (%p19) target = $region8
    $region5: #{tpu_custom_call.1} parent=1 // loop_body
      %s23 = ssub.s32 %s18, 1
      %s24 = ssub.s32 %s18, 2
      %s25 = sadd.s32 %s18, 1
      %s26 = ssub.s32 %s18, %s25
      %p27 = scmp.eq.s32.totalorder %s26, 0
      %s29 = sadd.s32 %s28, 1
      %s30 = scalar_select %p27, %s28, %s29
      %p33 = pneg %p27
      %p34 = scmp.eq.s32.totalorder %s18, 1
      %p35 = por %p33, %p34
      %p36 = scmp.ne.s32.totalorder %s28, %s31
      %p37 = scmp.eq.s32.totalorder %s18, 0
      %p38 = por %p36, %p37
      %p39 = scmp.ne.s32.totalorder %s28, %s31
      %p40 = scmp.eq.s32.totalorder %s23, 1
      %p41 = por %p39, %p40
      %p42 = scmp.ne.s32.totalorder %s31, %s32
      %p43 = scmp.eq.s32.totalorder %s23, 0
      %p44 = por %p42, %p43
      %p45 = scmp.ne.s32.totalorder %s31, %s32
      %p46 = scmp.eq.s32.totalorder %s24, 1
      %p47 = por %p45, %p46
      %p49 = scmp.ne.s32.totalorder %s32, %s48
      %p50 = scmp.eq.s32.totalorder %s24, 0
      %p51 = por %p49, %p50
      %s52 = ssub.s32 %s18, %s25
      %p53 = scmp.eq.s32.totalorder %s52, 0
      %s55 = sadd.s32 %s54, 1
      %s56 = scalar_select %p53, %s54, %s55
      %p59 = pneg %p53
      %p60 = scmp.eq.s32.totalorder %s18, 1
      %p61 = por %p59, %p60
      %p62 = scmp.ne.s32.totalorder %s54, %s57
      %p63 = scmp.eq.s32.totalorder %s18, 0
      %p64 = por %p62, %p63
      %p65 = scmp.ne.s32.totalorder %s54, %s57
      %p66 = scmp.eq.s32.totalorder %s23, 1
      %p67 = por %p65, %p66
      %p68 = scmp.ne.s32.totalorder %s57, %s58
      %p69 = scmp.eq.s32.totalorder %s23, 0
      %p70 = por %p68, %p69
      %p71 = scmp.ne.s32.totalorder %s57, %s58
      %p72 = scmp.eq.s32.totalorder %s24, 1
      %p73 = por %p71, %p72
      %p75 = scmp.ne.s32.totalorder %s58, %s74
      %p76 = scmp.eq.s32.totalorder %s24, 0
      %p77 = por %p75, %p76
      %s78 = ssub.s32 %s18, %s25
      %p79 = scmp.eq.s32.totalorder %s78, 0
      %s81 = sadd.s32 %s80, 1
      %s82 = scalar_select %p79, %s80, %s81
      %p85 = pneg %p79
      %p86 = scmp.eq.s32.totalorder %s18, 1
      %p87 = por %p85, %p86
      %p88 = scmp.ne.s32.totalorder %s80, %s83
      %p89 = scmp.eq.s32.totalorder %s18, 0
      %p90 = por %p88, %p89
      %p91 = scmp.ne.s32.totalorder %s80, %s83
      %p92 = scmp.eq.s32.totalorder %s23, 1
      %p93 = por %p91, %p92
      %p94 = scmp.ne.s32.totalorder %s83, %s84
      %p95 = scmp.eq.s32.totalorder %s23, 0
      %p96 = por %p94, %p95
      %p97 = scmp.ne.s32.totalorder %s83, %s84
      %p98 = scmp.eq.s32.totalorder %s24, 1
      %p99 = por %p97, %p98
      %p101 = scmp.ne.s32.totalorder %s84, %s100
      %p102 = scmp.eq.s32.totalorder %s24, 0
      %p103 = por %p101, %p102
      %s105 = sadd.s32 %s104, 1
      %p108 = scmp.eq.s32.totalorder %s18, 1
      %p109 = scmp.ne.s32.totalorder %s104, %s106
      %p110 = scmp.eq.s32.totalorder %s18, 0
      %p111 = por %p109, %p110
      %p112 = scmp.ne.s32.totalorder %s104, %s106
      %p113 = scmp.eq.s32.totalorder %s23, 1
      %p114 = por %p112, %p113
      %p115 = scmp.ne.s32.totalorder %s106, %s107
      %p116 = scmp.eq.s32.totalorder %s23, 0
      %p117 = por %p115, %p116
      %p118 = scmp.ne.s32.totalorder %s106, %s107
      %p119 = scmp.eq.s32.totalorder %s24, 1
      %p120 = por %p118, %p119
      %p122 = scmp.ne.s32.totalorder %s107, %s121
      %p123 = scmp.eq.s32.totalorder %s24, 0
      %p124 = por %p122, %p123
      %s126 = sadd.s32 %s125, 1
      %p129 = scmp.eq.s32.totalorder %s18, 1
      %p130 = scmp.ne.s32.totalorder %s125, %s127
      %p131 = scmp.eq.s32.totalorder %s18, 0
      %p132 = por %p130, %p131
      %p133 = scmp.ne.s32.totalorder %s125, %s127
      %p134 = scmp.eq.s32.totalorder %s23, 1
      %p135 = por %p133, %p134
      %p136 = scmp.ne.s32.totalorder %s127, %s128
      %p137 = scmp.eq.s32.totalorder %s23, 0
      %p138 = por %p136, %p137
      %p139 = scmp.ne.s32.totalorder %s127, %s128
      %p140 = scmp.eq.s32.totalorder %s24, 1
      %p141 = por %p139, %p140
      %p143 = scmp.ne.s32.totalorder %s128, %s142
      %p144 = scmp.eq.s32.totalorder %s24, 0
      %p145 = por %p143, %p144
      %s146 = ssub.s32 %s18, %s25
      %p147 = scmp.eq.s32.totalorder %s146, 0
      %s149 = sadd.s32 %s148, 1
      %s150 = scalar_select %p147, %s148, %s149
      %p153 = pneg %p147
      %p154 = scmp.eq.s32.totalorder %s18, 1
      %p155 = por %p153, %p154
      %p156 = scmp.ne.s32.totalorder %s148, %s151
      %p157 = scmp.eq.s32.totalorder %s18, 0
      %p158 = por %p156, %p157
      %p159 = scmp.ne.s32.totalorder %s148, %s151
      %p160 = scmp.eq.s32.totalorder %s23, 1
      %p161 = por %p159, %p160
      %p162 = scmp.ne.s32.totalorder %s151, %s152
      %p163 = scmp.eq.s32.totalorder %s23, 0
      %p164 = por %p162, %p163
      %p165 = scmp.ne.s32.totalorder %s151, %s152
      %p166 = scmp.eq.s32.totalorder %s24, 1
      %p167 = por %p165, %p166
      %p169 = scmp.ne.s32.totalorder %s152, %s168
      %p170 = scmp.eq.s32.totalorder %s24, 0
      %p171 = por %p169, %p170
      %p172 = scmp.le.s32.totalorder 1, %s18
      %p173 = scmp.lt.s32.totalorder %s18, 3
      %p174 = pnand %p172, %p173
      %p175 = pneg %p174
      // Predicated region
      $region9: #{tpu_custom_call.1} parent=5 // pred_check
        _
      $region10: #{tpu_custom_call.1} parent=5 // pred_check_branch
        %177 = sbr.rel (%p174) target = $region12
      $region11: #{tpu_custom_call.1} parent=5 // pred_region
        %s178 = ssub.s32 %s18, 1
        // Predicated region
        $region13: #{tpu_custom_call.1} parent=11 // pred_check
          %p179 = pneg %p117
        $region14: #{tpu_custom_call.1} parent=11 // pred_check_branch
          %181 = sbr.rel (%p179) target = $region16
        $region15: #{tpu_custom_call.1} parent=11 // pred_region
          %s183 = ssub.s32 1152, 1152
          %184 = vsyncadd [#allocation7], %s183
          %s185 = sshll.u32 [#allocation6], 4
          %s186 = int_to_ptr.vmem [resolvable:$true] %s185
          %191 = dma.hbm_to_vmem [thread:$0]  %s3, 1152, %s186, [#allocation7], 64, 64, 4
        $region16: #{tpu_custom_call.1} parent=11 // pred_fallthru
          _
        // Predicated region
        $region17: #{tpu_custom_call.1} parent=11 // pred_check
          %p192 = pneg %p138
        $region18: #{tpu_custom_call.1} parent=11 // pred_check_branch
          %194 = sbr.rel (%p192) target = $region20
        $region19: #{tpu_custom_call.1} parent=11 // pred_region
          _
        $region20: #{tpu_custom_call.1} parent=11 // pred_fallthru
          _
      $region12: #{tpu_custom_call.1} parent=5 // pred_fallthru
        _
      %p195 = scmp.lt.s32.totalorder %s18, 2
      // Predicated region
      $region21: #{tpu_custom_call.1} parent=5 // pred_check
        %p196 = pneg %p195
      $region22: #{tpu_custom_call.1} parent=5 // pred_check_branch
        %198 = sbr.rel (%p196) target = $region24
      $region23: #{tpu_custom_call.1} parent=5 // pred_region
        // Predicated region
        $region25: #{tpu_custom_call.1} parent=23 // pred_check
          %p199 = pneg %p38
        $region26: #{tpu_custom_call.1} parent=23 // pred_check_branch
          %201 = sbr.rel (%p199) target = $region28
        $region27: #{tpu_custom_call.1} parent=23 // pred_region
          %p202 = scmp.lt.s32.totalorder %s18, 1
          %s203 = scalar_select %p202, %s18, 1
          %s204 = smul.addr %s203, 4
          %s205 = smul.addr %s204, 4
          %s206 = scalar_lea.vmem %s0, %s205
        $region28: #{tpu_custom_call.1} parent=23 // pred_fallthru
          _
        // Predicated region
        $region29: #{tpu_custom_call.1} parent=23 // pred_check
          %p207 = pneg %p64
        $region30: #{tpu_custom_call.1} parent=23 // pred_check_branch
          %209 = sbr.rel (%p207) target = $region32
        $region31: #{tpu_custom_call.1} parent=23 // pred_region
          %s210 = sand.u32 %s54, 1
          %s211 = scalar_lea.sflag [#allocation4], %s210
          %s212 = sand.u32 %s54, 1
          %s213 = smul.addr %s212, 32
          %s214 = scalar_lea.vmem [#allocation3], %s213
          %s216 = ssub.s32 512, 512
          %217 = vsyncadd %s211, %s216
          %s218 = smul.addr %s18, 4
          %s219 = smul.addr %s218, 128
          %s220 = scalar_lea.hbm %s1, %s219
          %s221 = sshll.u32 %s214, 4
          %s222 = int_to_ptr.vmem [resolvable:$true] %s221
          %227 = dma.hbm_to_vmem [thread:$0]  %s220, 512, %s222, %s211, 128, 128, 8
        $region32: #{tpu_custom_call.1} parent=23 // pred_fallthru
          _
        // Predicated region
        $region33: #{tpu_custom_call.1} parent=23 // pred_check
          %p228 = pneg %p90
        $region34: #{tpu_custom_call.1} parent=23 // pred_check_branch
          %230 = sbr.rel (%p228) target = $region36
        $region35: #{tpu_custom_call.1} parent=23 // pred_region
          %p231 = scmp.lt.s32.totalorder %s18, 1
          %s232 = scalar_select %p231, %s18, 1
          %s233 = scalar_lea.vmem %s2, %s232
        $region36: #{tpu_custom_call.1} parent=23 // pred_fallthru
          _
      $region24: #{tpu_custom_call.1} parent=5 // pred_fallthru
        _
      %p234 = scmp.le.s32.totalorder 1, %s18
      %p235 = scmp.lt.s32.totalorder %s18, 3
      %p236 = pnand %p234, %p235
      %p237 = pneg %p236
      // Predicated region
      $region37: #{tpu_custom_call.1} parent=5 // pred_check
        _
      $region38: #{tpu_custom_call.1} parent=5 // pred_check_branch
        %239 = sbr.rel (%p236) target = $region40
      $region39: #{tpu_custom_call.1} parent=5 // pred_region
        %s240 = ssub.s32 %s18, 1
        %s241 = sand.u32 %s57, 1
        %s242 = scalar_lea.sflag [#allocation4], %s241
        %s243 = sand.u32 %s57, 1
        %s244 = smul.addr %s243, 32
        %s245 = scalar_lea.vmem [#allocation3], %s244
        // Predicated region
        $region41: #{tpu_custom_call.1} parent=39 // pred_check
          %p246 = pneg %p70
        $region42: #{tpu_custom_call.1} parent=39 // pred_check_branch
          %248 = sbr.rel (%p246) target = $region44
        $region43: #{tpu_custom_call.1} parent=39 // pred_region
          %249 = dma.done %s242, 512
        $region44: #{tpu_custom_call.1} parent=39 // pred_fallthru
          _
        // Predicated region
        $region45: #{tpu_custom_call.1} parent=39 // pred_check
          %p250 = pneg %p117
        $region46: #{tpu_custom_call.1} parent=39 // pred_check_branch
          %252 = sbr.rel (%p250) target = $region48
        $region47: #{tpu_custom_call.1} parent=39 // pred_region
          %253 = dma.done [#allocation7], 1152
        $region48: #{tpu_custom_call.1} parent=39 // pred_fallthru
          _
        %p254 = scmp.lt.s32.totalorder %s23, 1
        %s255 = scalar_select %p254, %s23, 1
        %s256 = smul.addr %s255, 4
        %s257 = smul.addr %s256, 4
        %s258 = scalar_lea.vmem %s0, %s257
        %p259 = pneg %p44
        %p260 = pneg %p41
        %s261 = sand.u32 %s57, 1
        %s262 = scalar_lea.sflag [#allocation4], %s261
        %s263 = sand.u32 %s57, 1
        %s264 = smul.addr %s263, 32
        %s265 = scalar_lea.vmem [#allocation3], %s264
        %p266 = pneg %p70
        %p267 = pneg %p67
        %p268 = scmp.lt.s32.totalorder %s23, 1
        %s269 = scalar_select %p268, %s23, 1
        %s270 = scalar_lea.vmem %s2, %s269
        %p271 = pneg %p96
        %p272 = pneg %p93
        %p273 = pneg %p117
        %p274 = pneg %p114
        %p275 = pneg %p138
        %p276 = pneg %p135
        %p277 = pneg %p164
        %p278 = pneg %p161
        %s279 = sand.u32 %s151, 1
        %s280 = scalar_lea.sflag [#allocation5], %s279
        %s281 = sand.u32 %s151, 1
        %s282 = smul.addr %s281, 2
        %s283 = scalar_lea.vmem [#allocation8], %s282
        %p284 = scmp.lt.s32.totalorder %s23, 1
        %s285 = scalar_select %p284, %s23, 1
        %s286 = smul.addr %s285, 4
        %s287 = smul.addr %s286, 4
        %s288 = scalar_lea.vmem %s0, %s287
        %p289 = scmp.lt.s32.totalorder %s23, 1
        %s290 = scalar_select %p289, %s23, 1
        %s291 = scalar_lea.vmem %s2, %s290
        %v294 = vld [vmem:[%s288] sm:$0xf]
        %v295 = vld [vmem:[%s288 + $0x4] sm:$0xf]
        %v296 = vld [vmem:[%s288 + $0x8] sm:$0xf]
        %v297 = vld [vmem:[%s288 + $0xc] sm:$0xf]
        %v298 = vld [vmem:[%s245] sm:$0xff]
        %v299 = vld [vmem:[%s245 + $0x8] sm:$0xff]
        %v300 = vld [vmem:[%s245 + $0x10] sm:$0xff]
        %v301 = vld [vmem:[%s245 + $0x18] sm:$0xff]
        %v302 = vld [vmem:[%s291] sm:$0x1]
        %v303 = vld [vmem:[#allocation6] sm:$0xf]
        %v304 = vld [vmem:[#allocation6 + $0x4] sm:$0xf]
        %v305 = vld [vmem:[#allocation6 + $0x8] sm:$0xf]
        %v306 = vld [vmem:[#allocation6 + $0xc] sm:$0xf]
        %v307 = vld [vmem:[#allocation6 + $0x10] sm:$0xf]
        %v308 = vld [vmem:[#allocation6 + $0x14] sm:$0xf]
        %v309 = vld [vmem:[#allocation6 + $0x18] sm:$0xf]
        %v310 = vld [vmem:[#allocation6 + $0x1c] sm:$0xf]
        %v311 = vld [vmem:[#allocation6 + $0x20] sm:$0xf]
        %v312 = vld [vmem:[#allocation6 + $0x24] sm:$0xf]
        %v313 = vld [vmem:[#allocation6 + $0x28] sm:$0xf]
        %v314 = vld [vmem:[#allocation6 + $0x2c] sm:$0xf]
        %v315 = vld [vmem:[#allocation6 + $0x30] sm:$0xf]
        %v316 = vld [vmem:[#allocation6 + $0x34] sm:$0xf]
        %v317 = vld [vmem:[#allocation6 + $0x38] sm:$0xf]
        %v318 = vld [vmem:[#allocation6 + $0x3c] sm:$0xf]
        %v319 = vld [vmem:[#allocation6 + $0x40] sm:$0xf]
        %v320 = vld [vmem:[#allocation6 + $0x44] sm:$0xf]
        %v321 = vld [vmem:[%s4] sm:$0x1]
        %v322 = vld [vmem:[%s4 + $0x1] sm:$0x1]
        %v323 = vld [vmem:[%s4 + $0x2] sm:$0x1]
        %vm324 = vcmask 551936
        %325 = vst.msk [vmem:[#allocation2] sm:$0xf] %vm324, 0
        %326 = vst.msk [vmem:[#allocation2 + $0x4] sm:$0xf] %vm324, 0
        %327 = vst.msk [vmem:[#allocation2 + $0x8] sm:$0xf] %vm324, 0
        %328 = vst.msk [vmem:[#allocation2 + $0xc] sm:$0xf] %vm324, 0
        %329 = vst.msk [vmem:[#allocation2 + $0x10] sm:$0xf] %vm324, 0
        %330 = vst.msk [vmem:[#allocation2 + $0x14] sm:$0xf] %vm324, 0
        %331 = vst.msk [vmem:[#allocation2 + $0x18] sm:$0xf] %vm324, 0
        %332 = vst.msk [vmem:[#allocation2 + $0x1c] sm:$0xf] %vm324, 0
        %333 = vst.msk [vmem:[#allocation2 + $0x20] sm:$0xf] %vm324, 0
        %334 = vst.msk [vmem:[#allocation2 + $0x24] sm:$0xf] %vm324, 0
        %335 = vst.msk [vmem:[#allocation2 + $0x28] sm:$0xf] %vm324, 0
        %336 = vst.msk [vmem:[#allocation2 + $0x2c] sm:$0xf] %vm324, 0
        %337 = vst.msk [vmem:[#allocation2 + $0x30] sm:$0xf] %vm324, 0
        %338 = vst.msk [vmem:[#allocation2 + $0x34] sm:$0xf] %vm324, 0
        %339 = vst.msk [vmem:[#allocation2 + $0x38] sm:$0xf] %vm324, 0
        %340 = vst.msk [vmem:[#allocation2 + $0x3c] sm:$0xf] %vm324, 0
        %vm341 = vcmask 527872
        %342 = vst.msk [vmem:[#allocation2] sm:$0xf] %vm341, 1065369472
        %343 = vst.msk [vmem:[#allocation2 + $0x4] sm:$0xf] %vm341, 1065369472
        %344 = vst.msk [vmem:[#allocation2 + $0x8] sm:$0xf] %vm341, 1065369472
        %345 = vst.msk [vmem:[#allocation2 + $0xc] sm:$0xf] %vm341, 1065369472
        %vm346 = vcmask 536072
        %347 = vst.msk [vmem:[#allocation2 + $0x10] sm:$0xf] %vm346, 1065369472
        %348 = vst.msk [vmem:[#allocation2 + $0x14] sm:$0xf] %vm346, 1065369472
        %349 = vst.msk [vmem:[#allocation2 + $0x18] sm:$0xf] %vm346, 1065369472
        %350 = vst.msk [vmem:[#allocation2 + $0x1c] sm:$0xf] %vm346, 1065369472
        %vm351 = vcmask 544272
        %352 = vst.msk [vmem:[#allocation2 + $0x20] sm:$0xf] %vm351, 1065369472
        %353 = vst.msk [vmem:[#allocation2 + $0x24] sm:$0xf] %vm351, 1065369472
        %354 = vst.msk [vmem:[#allocation2 + $0x28] sm:$0xf] %vm351, 1065369472
        %355 = vst.msk [vmem:[#allocation2 + $0x2c] sm:$0xf] %vm351, 1065369472
        %vm356 = vcmask 552472
        %357 = vst.msk [vmem:[#allocation2 + $0x30] sm:$0xf] %vm356, 1065369472
        %358 = vst.msk [vmem:[#allocation2 + $0x34] sm:$0xf] %vm356, 1065369472
        %359 = vst.msk [vmem:[#allocation2 + $0x38] sm:$0xf] %vm356, 1065369472
        %360 = vst.msk [vmem:[#allocation2 + $0x3c] sm:$0xf] %vm356, 1065369472
        %v365 = vunpack.c.l.b16 %v294
        %v366 = vunpack.c.l.b16 %v295
        %v367 = vunpack.c.l.b16 %v296
        %v368 = vunpack.c.l.b16 %v297
        %v369 = vpack.c.b16 %v366, %v365
        %v370 = vpack.c.b16 %v368, %v367
        %v373 = vunpack.c.l.b16 %v303
        %v374 = vunpack.c.l.b16 %v304
        %v375 = vpack.c.b16 %v374, %v373
        %vm377 = vcmask 130048
        %v379 = vsel %vm377, %v369, 0
        %v382 = vsel %vm377, %v370, 0
        %384 = vmatprep.subr.bf16.mxu0 0
        %385 = vmatpush1.bf16.msra.mxu0 0
        %386 = vmatprep.subr.bf16.mxu0 0
        %387 = vmatpush1.bf16.msra.mxu0 0
        %388 = vmatprep.subr.bf16.mxu0 0
        %389 = vmatpush1.bf16.msra.mxu0 0
        %390 = vmatprep.subr.bf16.mxu0 0
        %391 = vmatpush1.bf16.msra.mxu0 0
        %392 = vmatprep.subr.bf16.mxu0 0
        %393 = vmatpush1.bf16.msra.mxu0 0
        %394 = vmatprep.subr.bf16.mxu0 0
        %395 = vmatpush1.bf16.msra.mxu0 0
        %396 = vmatprep.subr.bf16.mxu0 0
        %397 = vmatpush1.bf16.msra.mxu0 0
        %398 = vmatprep.subr.bf16.mxu0 0
        %399 = vmatpush1.bf16.msra.mxu0 %v375
        %400 = vmatprep.subr.bf16.mxu0 0
        %401 = vmatpush2.bf16.msra.mxu0 0
        %402 = vmatprep.subr.bf16.mxu0 0
        %403 = vmatpush2.bf16.msra.mxu0 0
        %404 = vmatprep.subr.bf16.mxu0 0
        %405 = vmatpush2.bf16.msra.mxu0 0
        %406 = vmatprep.subr.bf16.mxu0 0
        %407 = vmatpush2.bf16.msra.mxu0 0
        %408 = vmatprep.subr.bf16.mxu0 0
        %409 = vmatpush2.bf16.msra.mxu0 0
        %410 = vmatprep.subr.bf16.mxu0 0
        %411 = vmatpush2.bf16.msra.mxu0 0
        %412 = vmatprep.subr.bf16.mxu0 0
        %413 = vmatpush2.bf16.msra.mxu0 0
        %414 = vmatprep.subr.bf16.mxu0 0
        %415 = vmatpush2.bf16.msra.mxu0 0
        %416 = vmatprep.mubr.bf16.mxu0 0
        %417 = vmatmul.mubr.bf16.gmra.mxu0 %v379
        %v418 = vpop.f32.mrf.mxu0
        %v419 = vadd.f32 0.0, %v418
        %v420 = vpop.f32.mrf.mxu0
        %v421 = vpop.f32.mrf.mxu0
        %v422 = vadd.f32 0.0, %v421
        %v423 = vpop.f32.mrf.mxu0
        %424 = vmatprep.mubr.bf16.mxu0 0
        %425 = vmatmul.mubr.bf16.gmra.mxu0 %v382
        %v426 = vpop.f32.mrf.mxu0
        %v427 = vadd.f32 0.0, %v426
        %v428 = vpop.f32.mrf.mxu0
        %v429 = vpop.f32.mrf.mxu0
        %v430 = vadd.f32 0.0, %v429
        %v431 = vpop.f32.mrf.mxu0
        %432 = vdwg.mxu0
        %437 = vrot.lane.b32.xlu0 %v419, 64
        %v438 = vpop.permute.xlu0 %437
        %439 = vrot.lane.b32.xlu0 %v422, 64
        %v440 = vpop.permute.xlu0 %439
        %441 = vrot.lane.b32.xlu0 %v427, 64
        %v442 = vpop.permute.xlu0 %441
        %443 = vrot.lane.b32.xlu0 %v430, 64
        %v444 = vpop.permute.xlu0 %443
        %449 = vxpose.xlu0.b32.start [1/16] %v438, 128
        %450 = vxpose.xlu0.b32.cont [2/16] %v440, 128
        %451 = vxpose.xlu0.b32.cont [3/16] %v442, 128
        %452 = vxpose.xlu0.b32.cont [4/16] %v444, 128
        %453 = vxpose.xlu0.b32.cont [5/16] 0.0, 128
        %454 = vxpose.xlu0.b32.cont [6/16] 0.0, 128
        %455 = vxpose.xlu0.b32.cont [7/16] 0.0, 128
        %456 = vxpose.xlu0.b32.cont [8/16] 0.0, 128
        %457 = vxpose.xlu0.b32.cont [9/16] 0.0, 128
        %458 = vxpose.xlu0.b32.cont [10/16] 0.0, 128
        %459 = vxpose.xlu0.b32.cont [11/16] 0.0, 128
        %460 = vxpose.xlu0.b32.cont [12/16] 0.0, 128
        %461 = vxpose.xlu0.b32.cont [13/16] 0.0, 128
        %462 = vxpose.xlu0.b32.cont [14/16] 0.0, 128
        %463 = vxpose.xlu0.b32.cont [15/16] 0.0, 128
        %464 = vxpose.xlu0.b32.end [16/16] 0.0, 128
        %v465 = vpop.trf.xlu0
        %v466 = vpop.trf.xlu0
        %v467 = vpop.trf.xlu0
        %v468 = vpop.trf.xlu0
        %v469 = vpop.trf.xlu0
        %v470 = vpop.trf.xlu0
        %v471 = vpop.trf.xlu0
        %v472 = vpop.trf.xlu0
        %v473 = vpop.trf.xlu0
        %v474 = vpop.trf.xlu0
        %v475 = vpop.trf.xlu0
        %v476 = vpop.trf.xlu0
        %v477 = vpop.trf.xlu0
        %v478 = vpop.trf.xlu0
        %v479 = vpop.trf.xlu0
        %v480 = vpop.trf.xlu0
        %481 = vset.pattern.permute.xlu0 68
        %482 = vperm.xlu0 %481, %v419
        %v483 = vpop.permute.xlu0 %482
        %485 = vset.pattern.permute.xlu0 68
        %486 = vperm.xlu0 %485, %v422
        %v487 = vpop.permute.xlu0 %486
        %489 = vset.pattern.permute.xlu0 68
        %490 = vperm.xlu0 %489, %v427
        %v491 = vpop.permute.xlu0 %490
        %493 = vset.pattern.permute.xlu0 68
        %494 = vperm.xlu0 %493, %v430
        %v495 = vpop.permute.xlu0 %494
        %v497 = vlaneseq
        %v498 = vshrl.u32 %v497, 7
        %v499 = vsub.s32 0, %v498
        %v500 = vrot.slane %v465, %v499
        %v501 = vadd.f32 %v483, %v500
        %v502 = vadd.f32 %v487, %v500
        %v503 = vadd.f32 %v491, %v500
        %v504 = vadd.f32 %v495, %v500
        %505 = vset.pattern.permute.xlu0 69
        %506 = vperm.xlu0 %505, %v419
        %v507 = vpop.permute.xlu0 %506
        %509 = vset.pattern.permute.xlu0 69
        %510 = vperm.xlu0 %509, %v422
        %v511 = vpop.permute.xlu0 %510
        %513 = vset.pattern.permute.xlu0 69
        %514 = vperm.xlu0 %513, %v427
        %v515 = vpop.permute.xlu0 %514
        %517 = vset.pattern.permute.xlu0 69
        %518 = vperm.xlu0 %517, %v430
        %v519 = vpop.permute.xlu0 %518
        %v521 = vlaneseq
        %v522 = vshrl.u32 %v521, 7
        %v523 = vsub.s32 1, %v522
        %v524 = vrot.slane %v465, %v523
        %v525 = vadd.f32 %v507, %v524
        %v526 = vadd.f32 %v511, %v524
        %v527 = vadd.f32 %v515, %v524
        %v528 = vadd.f32 %v519, %v524
        %529 = vset.pattern.permute.xlu0 70
        %530 = vperm.xlu0 %529, %v419
        %v531 = vpop.permute.xlu0 %530
        %533 = vset.pattern.permute.xlu0 70
        %534 = vperm.xlu0 %533, %v422
        %v535 = vpop.permute.xlu0 %534
        %537 = vset.pattern.permute.xlu0 70
        %538 = vperm.xlu0 %537, %v427
        %v539 = vpop.permute.xlu0 %538
        %541 = vset.pattern.permute.xlu0 70
        %542 = vperm.xlu0 %541, %v430
        %v543 = vpop.permute.xlu0 %542
        %v545 = vlaneseq
        %v546 = vshrl.u32 %v545, 7
        %v547 = vsub.s32 2, %v546
        %v548 = vrot.slane %v465, %v547
        %v549 = vadd.f32 %v531, %v548
        %v550 = vadd.f32 %v535, %v548
        %v551 = vadd.f32 %v539, %v548
        %v552 = vadd.f32 %v543, %v548
        %553 = vset.pattern.permute.xlu0 71
        %554 = vperm.xlu0 %553, %v419
        %v555 = vpop.permute.xlu0 %554
        %557 = vset.pattern.permute.xlu0 71
        %558 = vperm.xlu0 %557, %v422
        %v559 = vpop.permute.xlu0 %558
        %561 = vset.pattern.permute.xlu0 71
        %562 = vperm.xlu0 %561, %v427
        %v563 = vpop.permute.xlu0 %562
        %565 = vset.pattern.permute.xlu0 71
        %566 = vperm.xlu0 %565, %v430
        %v567 = vpop.permute.xlu0 %566
        %v569 = vlaneseq
        %v570 = vshrl.u32 %v569, 7
        %v571 = vsub.s32 3, %v570
        %v572 = vrot.slane %v465, %v571
        %v573 = vadd.f32 %v555, %v572
        %v574 = vadd.f32 %v559, %v572
        %v575 = vadd.f32 %v563, %v572
        %v576 = vadd.f32 %v567, %v572
        %581 = vrot.lane.b32.xlu0 %v525, 32
        %v582 = vpop.permute.xlu0 %581
        %583 = vrot.lane.b32.xlu0 %v526, 32
        %v584 = vpop.permute.xlu0 %583
        %585 = vrot.lane.b32.xlu0 %v527, 32
        %v586 = vpop.permute.xlu0 %585
        %587 = vrot.lane.b32.xlu0 %v528, 32
        %v588 = vpop.permute.xlu0 %587
        %597 = vrot.lane.b32.xlu0 %v549, 64
        %v598 = vpop.permute.xlu0 %597
        %599 = vrot.lane.b32.xlu0 %v550, 64
        %v600 = vpop.permute.xlu0 %599
        %601 = vrot.lane.b32.xlu0 %v551, 64
        %v602 = vpop.permute.xlu0 %601
        %603 = vrot.lane.b32.xlu0 %v552, 64
        %v604 = vpop.permute.xlu0 %603
        %613 = vrot.lane.b32.xlu0 %v573, 96
        %v614 = vpop.permute.xlu0 %613
        %615 = vrot.lane.b32.xlu0 %v574, 96
        %v616 = vpop.permute.xlu0 %615
        %617 = vrot.lane.b32.xlu0 %v575, 96
        %v618 = vpop.permute.xlu0 %617
        %619 = vrot.lane.b32.xlu0 %v576, 96
        %v620 = vpop.permute.xlu0 %619
        %vm625 = vcmask 261120
        %v626 = vsel %vm625, %v501, %v582
        %v627 = vsel %vm625, %v502, %v584
        %v628 = vsel %vm625, %v503, %v586
        %v629 = vsel %vm625, %v504, %v588
        %vm630 = vcmask 523264
        %v631 = vsel %vm630, %v626, %v598
        %v632 = vsel %vm630, %v627, %v600
        %v633 = vsel %vm630, %v628, %v602
        %v634 = vsel %vm630, %v629, %v604
        %vm635 = vcmask 785408
        %v636 = vsel %vm635, %v631, %v614
        %v637 = vsel %vm635, %v632, %v616
        %v638 = vsel %vm635, %v633, %v618
        %v639 = vsel %vm635, %v634, %v620
        %vm640 = vcmp.gt.f32.partialorder %v636, 0.0
        %vm641 = vcmp.gt.f32.partialorder %v637, 0.0
        %vm642 = vcmp.gt.f32.partialorder %v638, 0.0
        %vm643 = vcmp.gt.f32.partialorder %v639, 0.0
        %v644 = vmul.f32 %v636, 0.2
        %v645 = vmul.f32 %v637, 0.2
        %v646 = vmul.f32 %v638, 0.2
        %v647 = vmul.f32 %v639, 0.2
        %v648 = vsel %vm640, %v636, %v644
        %v649 = vsel %vm641, %v637, %v645
        %v650 = vsel %vm642, %v638, %v646
        %v651 = vsel %vm643, %v639, %v647
        %v652 = vadd.f32 %v648, %v298
        %v653 = vadd.f32 %v649, %v299
        %v654 = vadd.f32 %v650, %v300
        %v655 = vadd.f32 %v651, %v301
        %656 = vmax.xlane.f32.xlu0 %v652
        %v657 = vpop.xlane.xlu0 %656
        %658 = vmax.xlane.f32.xlu0 %v653
        %v659 = vpop.xlane.xlu0 %658
        %660 = vmax.xlane.f32.xlu0 %v654
        %v661 = vpop.xlane.xlu0 %660
        %662 = vmax.xlane.f32.xlu0 %v655
        %v663 = vpop.xlane.xlu0 %662
        %v664 = vsub.f32 %v652, %v657
        %v665 = vsub.f32 %v653, %v659
        %v666 = vsub.f32 %v654, %v661
        %v667 = vsub.f32 %v655, %v663
        %v668 = vmul.f32 %v664, 1.442695
        %v669 = vpow.pop %v668
        %v670 = vmul.f32 %v665, 1.442695
        %v671 = vpow.pop %v670
        %v672 = vmul.f32 %v666, 1.442695
        %v673 = vpow.pop %v672
        %v674 = vmul.f32 %v667, 1.442695
        %v675 = vpow.pop %v674
        %v676 = vpack.c.bf16 %v422, %v419
        %v677 = vpack.c.bf16 %v430, %v427
        %v680 = vunpack.c.l.b16 %v676
        %v681 = vunpack.c.h.b16 %v676
        %v682 = vunpack.c.l.b16 %v677
        %v683 = vunpack.c.h.b16 %v677
        %v684 = vpack.c.b16 %v680, %v680
        %v685 = vpack.c.b16 %v681, %v681
        %v686 = vpack.c.b16 %v682, %v682
        %v687 = vpack.c.b16 %v683, %v683
        %vm692 = vcmask 125952
        %693 = vst.msk [vmem:[#allocation2] sm:$0xf] %vm692, %v684
        %694 = vst.msk [vmem:[#allocation2 + $0x4] sm:$0xf] %vm692, %v685
        %695 = vst.msk [vmem:[#allocation2 + $0x8] sm:$0xf] %vm692, %v686
        %696 = vst.msk [vmem:[#allocation2 + $0xc] sm:$0xf] %vm692, %v687
        %vm697 = vcmask 257152
        %698 = vst.msk [vmem:[#allocation2 + $0x10] sm:$0xf] %vm697, %v684
        %699 = vst.msk [vmem:[#allocation2 + $0x14] sm:$0xf] %vm697, %v685
        %700 = vst.msk [vmem:[#allocation2 + $0x18] sm:$0xf] %vm697, %v686
        %701 = vst.msk [vmem:[#allocation2 + $0x1c] sm:$0xf] %vm697, %v687
        %vm702 = vcmask 388352
        %703 = vst.msk [vmem:[#allocation2 + $0x20] sm:$0xf] %vm702, %v684
        %704 = vst.msk [vmem:[#allocation2 + $0x24] sm:$0xf] %vm702, %v685
        %705 = vst.msk [vmem:[#allocation2 + $0x28] sm:$0xf] %vm702, %v686
        %706 = vst.msk [vmem:[#allocation2 + $0x2c] sm:$0xf] %vm702, %v687
        %vm707 = vcmask 519552
        %708 = vst.msk [vmem:[#allocation2 + $0x30] sm:$0xf] %vm707, %v684
        %709 = vst.msk [vmem:[#allocation2 + $0x34] sm:$0xf] %vm707, %v685
        %710 = vst.msk [vmem:[#allocation2 + $0x38] sm:$0xf] %vm707, %v686
        %711 = vst.msk [vmem:[#allocation2 + $0x3c] sm:$0xf] %vm707, %v687
        %v712 = vpack.c.bf16 %v671, %v669
        %v713 = vpack.c.bf16 %v675, %v673
        %v714 = vld [vmem:[#allocation2] sm:$0xf]
        %v715 = vld [vmem:[#allocation2 + $0x4] sm:$0xf]
        %v716 = vld [vmem:[#allocation2 + $0x8] sm:$0xf]
        %v717 = vld [vmem:[#allocation2 + $0xc] sm:$0xf]
        %v718 = vld [vmem:[#allocation2 + $0x10] sm:$0xf]
        %v719 = vld [vmem:[#allocation2 + $0x14] sm:$0xf]
        %v720 = vld [vmem:[#allocation2 + $0x18] sm:$0xf]
        %v721 = vld [vmem:[#allocation2 + $0x1c] sm:$0xf]
        %v722 = vld [vmem:[#allocation2 + $0x20] sm:$0xf]
        %v723 = vld [vmem:[#allocation2 + $0x24] sm:$0xf]
        %v724 = vld [vmem:[#allocation2 + $0x28] sm:$0xf]
        %v725 = vld [vmem:[#allocation2 + $0x2c] sm:$0xf]
        %v726 = vld [vmem:[#allocation2 + $0x30] sm:$0xf]
        %v727 = vld [vmem:[#allocation2 + $0x34] sm:$0xf]
        %v728 = vld [vmem:[#allocation2 + $0x38] sm:$0xf]
        %v729 = vld [vmem:[#allocation2 + $0x3c] sm:$0xf]
        %v746 = vunpack.c.l.b16 %v714
        %v747 = vunpack.c.l.b16 %v715
        %v748 = vunpack.c.l.b16 %v716
        %v749 = vunpack.c.l.b16 %v717
        %v750 = vunpack.c.l.b16 %v718
        %v751 = vunpack.c.l.b16 %v719
        %v752 = vunpack.c.l.b16 %v720
        %v753 = vunpack.c.l.b16 %v721
        %v754 = vunpack.c.l.b16 %v722
        %v755 = vunpack.c.l.b16 %v723
        %v756 = vunpack.c.l.b16 %v724
        %v757 = vunpack.c.l.b16 %v725
        %v758 = vunpack.c.l.b16 %v726
        %v759 = vunpack.c.l.b16 %v727
        %v760 = vunpack.c.l.b16 %v728
        %v761 = vunpack.c.l.b16 %v729
        %v762 = vpack.c.b16 %v747, %v746
        %v763 = vpack.c.b16 %v749, %v748
        %v764 = vpack.c.b16 %v751, %v750
        %v765 = vpack.c.b16 %v753, %v752
        %v766 = vpack.c.b16 %v755, %v754
        %v767 = vpack.c.b16 %v757, %v756
        %v768 = vpack.c.b16 %v759, %v758
        %v769 = vpack.c.b16 %v761, %v760
        %778 = vmatprep.subr.bf16.mxu0 0
        %779 = vmatpush1.bf16.msra.mxu0 %v769
        %780 = vmatprep.subr.bf16.mxu0 0
        %781 = vmatpush1.bf16.msra.mxu0 %v768
        %782 = vmatprep.subr.bf16.mxu0 0
        %783 = vmatpush1.bf16.msra.mxu0 %v767
        %784 = vmatprep.subr.bf16.mxu0 0
        %785 = vmatpush1.bf16.msra.mxu0 %v766
        %786 = vmatprep.subr.bf16.mxu0 0
        %787 = vmatpush1.bf16.msra.mxu0 %v765
        %788 = vmatprep.subr.bf16.mxu0 0
        %789 = vmatpush1.bf16.msra.mxu0 %v764
        %790 = vmatprep.subr.bf16.mxu0 0
        %791 = vmatpush1.bf16.msra.mxu0 %v763
        %792 = vmatprep.subr.bf16.mxu0 0
        %793 = vmatpush1.bf16.msra.mxu0 %v762
        %794 = vmatprep.subr.bf16.mxu0 0
        %795 = vmatpush2.bf16.msra.mxu0 0
        %796 = vmatprep.subr.bf16.mxu0 0
        %797 = vmatpush2.bf16.msra.mxu0 0
        %798 = vmatprep.subr.bf16.mxu0 0
        %799 = vmatpush2.bf16.msra.mxu0 0
        %800 = vmatprep.subr.bf16.mxu0 0
        %801 = vmatpush2.bf16.msra.mxu0 0
        %802 = vmatprep.subr.bf16.mxu0 0
        %803 = vmatpush2.bf16.msra.mxu0 0
        %804 = vmatprep.subr.bf16.mxu0 0
        %805 = vmatpush2.bf16.msra.mxu0 0
        %806 = vmatprep.subr.bf16.mxu0 0
        %807 = vmatpush2.bf16.msra.mxu0 0
        %808 = vmatprep.subr.bf16.mxu0 0
        %809 = vmatpush2.bf16.msra.mxu0 0
        %810 = vmatprep.mubr.bf16.mxu0 0
        %811 = vmatmul.mubr.bf16.gmra.mxu0 %v712
        %v812 = vpop.f32.mrf.mxu0
        %v813 = vadd.f32 0.0, %v812
        %v814 = vpop.f32.mrf.mxu0
        %v815 = vpop.f32.mrf.mxu0
        %v816 = vadd.f32 0.0, %v815
        %v817 = vpop.f32.mrf.mxu0
        %818 = vmatprep.mubr.bf16.mxu0 0
        %819 = vmatmul.mubr.bf16.gmra.mxu0 %v713
        %v820 = vpop.f32.mrf.mxu0
        %v821 = vadd.f32 0.0, %v820
        %v822 = vpop.f32.mrf.mxu0
        %v823 = vpop.f32.mrf.mxu0
        %v824 = vadd.f32 0.0, %v823
        %v825 = vpop.f32.mrf.mxu0
        %826 = vdwg.mxu0
        %v827 = vrcp.pop %v813
        %v828 = vrcp.pop %v816
        %v829 = vrcp.pop %v821
        %v830 = vrcp.pop %v824
        %832 = vset.pattern.permute.xlu0 64
        %833 = vperm.xlu0 %832, %v827
        %v834 = vpop.permute.xlu0 %833
        %837 = vset.pattern.permute.xlu0 64
        %838 = vperm.xlu0 %837, %v828
        %v839 = vpop.permute.xlu0 %838
        %842 = vset.pattern.permute.xlu0 64
        %843 = vperm.xlu0 %842, %v829
        %v844 = vpop.permute.xlu0 %843
        %847 = vset.pattern.permute.xlu0 64
        %848 = vperm.xlu0 %847, %v830
        %v849 = vpop.permute.xlu0 %848
        %851 = vset.pattern.permute.xlu0 65
        %852 = vperm.xlu0 %851, %v827
        %v853 = vpop.permute.xlu0 %852
        %855 = vset.pattern.permute.xlu0 65
        %856 = vperm.xlu0 %855, %v828
        %v857 = vpop.permute.xlu0 %856
        %859 = vset.pattern.permute.xlu0 65
        %860 = vperm.xlu0 %859, %v829
        %v861 = vpop.permute.xlu0 %860
        %863 = vset.pattern.permute.xlu0 65
        %864 = vperm.xlu0 %863, %v830
        %v865 = vpop.permute.xlu0 %864
        %867 = vset.pattern.permute.xlu0 66
        %868 = vperm.xlu0 %867, %v827
        %v869 = vpop.permute.xlu0 %868
        %871 = vset.pattern.permute.xlu0 66
        %872 = vperm.xlu0 %871, %v828
        %v873 = vpop.permute.xlu0 %872
        %875 = vset.pattern.permute.xlu0 66
        %876 = vperm.xlu0 %875, %v829
        %v877 = vpop.permute.xlu0 %876
        %879 = vset.pattern.permute.xlu0 66
        %880 = vperm.xlu0 %879, %v830
        %v881 = vpop.permute.xlu0 %880
        %883 = vset.pattern.permute.xlu0 67
        %884 = vperm.xlu0 %883, %v827
        %v885 = vpop.permute.xlu0 %884
        %887 = vset.pattern.permute.xlu0 67
        %888 = vperm.xlu0 %887, %v828
        %v889 = vpop.permute.xlu0 %888
        %891 = vset.pattern.permute.xlu0 67
        %892 = vperm.xlu0 %891, %v829
        %v893 = vpop.permute.xlu0 %892
        %895 = vset.pattern.permute.xlu0 67
        %896 = vperm.xlu0 %895, %v830
        %v897 = vpop.permute.xlu0 %896
        %v899 = vsel %vm377, %v834, %v853
        %v900 = vsel %vm377, %v839, %v857
        %v901 = vsel %vm377, %v844, %v861
        %v902 = vsel %vm377, %v849, %v865
        %v903 = vsel %vm625, %v899, %v869
        %v904 = vsel %vm625, %v900, %v873
        %v905 = vsel %vm625, %v901, %v877
        %v906 = vsel %vm625, %v902, %v881
        %vm907 = vcmask 392192
        %v908 = vsel %vm907, %v903, %v885
        %v909 = vsel %vm907, %v904, %v889
        %v910 = vsel %vm907, %v905, %v893
        %v911 = vsel %vm907, %v906, %v897
        %v912 = vmul.f32 %v813, %v908
        %v913 = vmul.f32 %v816, %v909
        %v914 = vmul.f32 %v821, %v910
        %v915 = vmul.f32 %v824, %v911
        %v916 = vlaneseq
        %v917 = vshrl.u32 %v916, 7
        %v918 = vsub.s32 0, %v917
        %v919 = vrot.slane %v321, %v918
        %v920 = vadd.f32 %v912, %v919
        %v921 = vadd.f32 %v913, %v919
        %v922 = vadd.f32 %v914, %v919
        %v923 = vadd.f32 %v915, %v919
        %v924 = vmax.f32 %v920, 0.0
        %v925 = vmax.f32 %v921, 0.0
        %v926 = vmax.f32 %v922, 0.0
        %v927 = vmax.f32 %v923, 0.0
        %v928 = vpack.c.bf16 %v925, %v924
        %v929 = vpack.c.bf16 %v927, %v926
        %v938 = vunpack.c.l.b16 %v305
        %v939 = vunpack.c.l.b16 %v306
        %v940 = vunpack.c.l.b16 %v307
        %v941 = vunpack.c.l.b16 %v308
        %v942 = vunpack.c.l.b16 %v309
        %v943 = vunpack.c.l.b16 %v310
        %v944 = vunpack.c.l.b16 %v311
        %v945 = vunpack.c.l.b16 %v312
        %v946 = vpack.c.b16 %v939, %v938
        %v947 = vpack.c.b16 %v941, %v940
        %v948 = vpack.c.b16 %v943, %v942
        %v949 = vpack.c.b16 %v945, %v944
        %v955 = vsel %vm630, %v928, 0
        %v958 = vsel %vm630, %v929, 0
        %960 = vmatprep.subr.bf16.mxu0 0
        %961 = vmatpush1.bf16.msra.mxu0 0
        %962 = vmatprep.subr.bf16.mxu0 0
        %963 = vmatpush1.bf16.msra.mxu0 0
        %964 = vmatprep.subr.bf16.mxu0 0
        %965 = vmatpush1.bf16.msra.mxu0 0
        %966 = vmatprep.subr.bf16.mxu0 0
        %967 = vmatpush1.bf16.msra.mxu0 0
        %968 = vmatprep.subr.bf16.mxu0 0
        %969 = vmatpush1.bf16.msra.mxu0 %v949
        %970 = vmatprep.subr.bf16.mxu0 0
        %971 = vmatpush1.bf16.msra.mxu0 %v948
        %972 = vmatprep.subr.bf16.mxu0 0
        %973 = vmatpush1.bf16.msra.mxu0 %v947
        %974 = vmatprep.subr.bf16.mxu0 0
        %975 = vmatpush1.bf16.msra.mxu0 %v946
        %976 = vmatprep.subr.bf16.mxu0 0
        %977 = vmatpush2.bf16.msra.mxu0 0
        %978 = vmatprep.subr.bf16.mxu0 0
        %979 = vmatpush2.bf16.msra.mxu0 0
        %980 = vmatprep.subr.bf16.mxu0 0
        %981 = vmatpush2.bf16.msra.mxu0 0
        %982 = vmatprep.subr.bf16.mxu0 0
        %983 = vmatpush2.bf16.msra.mxu0 0
        %984 = vmatprep.subr.bf16.mxu0 0
        %985 = vmatpush2.bf16.msra.mxu0 0
        %986 = vmatprep.subr.bf16.mxu0 0
        %987 = vmatpush2.bf16.msra.mxu0 0
        %988 = vmatprep.subr.bf16.mxu0 0
        %989 = vmatpush2.bf16.msra.mxu0 0
        %990 = vmatprep.subr.bf16.mxu0 0
        %991 = vmatpush2.bf16.msra.mxu0 0
        %992 = vmatprep.mubr.bf16.mxu0 0
        %993 = vmatmul.mubr.bf16.gmra.mxu0 %v955
        %v994 = vpop.f32.mrf.mxu0
        %v995 = vadd.f32 0.0, %v994
        %v996 = vpop.f32.mrf.mxu0
        %v997 = vpop.f32.mrf.mxu0
        %v998 = vadd.f32 0.0, %v997
        %v999 = vpop.f32.mrf.mxu0
        %1000 = vmatprep.mubr.bf16.mxu0 0
        %1001 = vmatmul.mubr.bf16.gmra.mxu0 %v958
        %v1002 = vpop.f32.mrf.mxu0
        %v1003 = vadd.f32 0.0, %v1002
        %v1004 = vpop.f32.mrf.mxu0
        %v1005 = vpop.f32.mrf.mxu0
        %v1006 = vadd.f32 0.0, %v1005
        %v1007 = vpop.f32.mrf.mxu0
        %1008 = vdwg.mxu0
        %1013 = vrot.lane.b32.xlu0 %v995, 64
        %v1014 = vpop.permute.xlu0 %1013
        %1015 = vrot.lane.b32.xlu0 %v998, 64
        %v1016 = vpop.permute.xlu0 %1015
        %1017 = vrot.lane.b32.xlu0 %v1003, 64
        %v1018 = vpop.permute.xlu0 %1017
        %1019 = vrot.lane.b32.xlu0 %v1006, 64
        %v1020 = vpop.permute.xlu0 %1019
        %1025 = vxpose.xlu0.b32.start [1/16] %v1014, 128
        %1026 = vxpose.xlu0.b32.cont [2/16] %v1016, 128
        %1027 = vxpose.xlu0.b32.cont [3/16] %v1018, 128
        %1028 = vxpose.xlu0.b32.cont [4/16] %v1020, 128
        %1029 = vxpose.xlu0.b32.cont [5/16] 0.0, 128
        %1030 = vxpose.xlu0.b32.cont [6/16] 0.0, 128
        %1031 = vxpose.xlu0.b32.cont [7/16] 0.0, 128
        %1032 = vxpose.xlu0.b32.cont [8/16] 0.0, 128
        %1033 = vxpose.xlu0.b32.cont [9/16] 0.0, 128
        %1034 = vxpose.xlu0.b32.cont [10/16] 0.0, 128
        %1035 = vxpose.xlu0.b32.cont [11/16] 0.0, 128
        %1036 = vxpose.xlu0.b32.cont [12/16] 0.0, 128
        %1037 = vxpose.xlu0.b32.cont [13/16] 0.0, 128
        %1038 = vxpose.xlu0.b32.cont [14/16] 0.0, 128
        %1039 = vxpose.xlu0.b32.cont [15/16] 0.0, 128
        %1040 = vxpose.xlu0.b32.end [16/16] 0.0, 128
        %v1041 = vpop.trf.xlu0
        %v1042 = vpop.trf.xlu0
        %v1043 = vpop.trf.xlu0
        %v1044 = vpop.trf.xlu0
        %v1045 = vpop.trf.xlu0
        %v1046 = vpop.trf.xlu0
        %v1047 = vpop.trf.xlu0
        %v1048 = vpop.trf.xlu0
        %v1049 = vpop.trf.xlu0
        %v1050 = vpop.trf.xlu0
        %v1051 = vpop.trf.xlu0
        %v1052 = vpop.trf.xlu0
        %v1053 = vpop.trf.xlu0
        %v1054 = vpop.trf.xlu0
        %v1055 = vpop.trf.xlu0
        %v1056 = vpop.trf.xlu0
        %1057 = vset.pattern.permute.xlu0 68
        %1058 = vperm.xlu0 %1057, %v995
        %v1059 = vpop.permute.xlu0 %1058
        %1061 = vset.pattern.permute.xlu0 68
        %1062 = vperm.xlu0 %1061, %v998
        %v1063 = vpop.permute.xlu0 %1062
        %1065 = vset.pattern.permute.xlu0 68
        %1066 = vperm.xlu0 %1065, %v1003
        %v1067 = vpop.permute.xlu0 %1066
        %1069 = vset.pattern.permute.xlu0 68
        %1070 = vperm.xlu0 %1069, %v1006
        %v1071 = vpop.permute.xlu0 %1070
        %v1073 = vlaneseq
        %v1074 = vshrl.u32 %v1073, 7
        %v1075 = vsub.s32 0, %v1074
        %v1076 = vrot.slane %v1041, %v1075
        %v1077 = vadd.f32 %v1059, %v1076
        %v1078 = vadd.f32 %v1063, %v1076
        %v1079 = vadd.f32 %v1067, %v1076
        %v1080 = vadd.f32 %v1071, %v1076
        %1081 = vset.pattern.permute.xlu0 69
        %1082 = vperm.xlu0 %1081, %v995
        %v1083 = vpop.permute.xlu0 %1082
        %1085 = vset.pattern.permute.xlu0 69
        %1086 = vperm.xlu0 %1085, %v998
        %v1087 = vpop.permute.xlu0 %1086
        %1089 = vset.pattern.permute.xlu0 69
        %1090 = vperm.xlu0 %1089, %v1003
        %v1091 = vpop.permute.xlu0 %1090
        %1093 = vset.pattern.permute.xlu0 69
        %1094 = vperm.xlu0 %1093, %v1006
        %v1095 = vpop.permute.xlu0 %1094
        %v1097 = vlaneseq
        %v1098 = vshrl.u32 %v1097, 7
        %v1099 = vsub.s32 1, %v1098
        %v1100 = vrot.slane %v1041, %v1099
        %v1101 = vadd.f32 %v1083, %v1100
        %v1102 = vadd.f32 %v1087, %v1100
        %v1103 = vadd.f32 %v1091, %v1100
        %v1104 = vadd.f32 %v1095, %v1100
        %1105 = vset.pattern.permute.xlu0 70
        %1106 = vperm.xlu0 %1105, %v995
        %v1107 = vpop.permute.xlu0 %1106
        %1109 = vset.pattern.permute.xlu0 70
        %1110 = vperm.xlu0 %1109, %v998
        %v1111 = vpop.permute.xlu0 %1110
        %1113 = vset.pattern.permute.xlu0 70
        %1114 = vperm.xlu0 %1113, %v1003
        %v1115 = vpop.permute.xlu0 %1114
        %1117 = vset.pattern.permute.xlu0 70
        %1118 = vperm.xlu0 %1117, %v1006
        %v1119 = vpop.permute.xlu0 %1118
        %v1121 = vlaneseq
        %v1122 = vshrl.u32 %v1121, 7
        %v1123 = vsub.s32 2, %v1122
        %v1124 = vrot.slane %v1041, %v1123
        %v1125 = vadd.f32 %v1107, %v1124
        %v1126 = vadd.f32 %v1111, %v1124
        %v1127 = vadd.f32 %v1115, %v1124
        %v1128 = vadd.f32 %v1119, %v1124
        %1129 = vset.pattern.permute.xlu0 71
        %1130 = vperm.xlu0 %1129, %v995
        %v1131 = vpop.permute.xlu0 %1130
        %1133 = vset.pattern.permute.xlu0 71
        %1134 = vperm.xlu0 %1133, %v998
        %v1135 = vpop.permute.xlu0 %1134
        %1137 = vset.pattern.permute.xlu0 71
        %1138 = vperm.xlu0 %1137, %v1003
        %v1139 = vpop.permute.xlu0 %1138
        %1141 = vset.pattern.permute.xlu0 71
        %1142 = vperm.xlu0 %1141, %v1006
        %v1143 = vpop.permute.xlu0 %1142
        %v1145 = vlaneseq
        %v1146 = vshrl.u32 %v1145, 7
        %v1147 = vsub.s32 3, %v1146
        %v1148 = vrot.slane %v1041, %v1147
        %v1149 = vadd.f32 %v1131, %v1148
        %v1150 = vadd.f32 %v1135, %v1148
        %v1151 = vadd.f32 %v1139, %v1148
        %v1152 = vadd.f32 %v1143, %v1148
        %1157 = vrot.lane.b32.xlu0 %v1101, 32
        %v1158 = vpop.permute.xlu0 %1157
        %1159 = vrot.lane.b32.xlu0 %v1102, 32
        %v1160 = vpop.permute.xlu0 %1159
        %1161 = vrot.lane.b32.xlu0 %v1103, 32
        %v1162 = vpop.permute.xlu0 %1161
        %1163 = vrot.lane.b32.xlu0 %v1104, 32
        %v1164 = vpop.permute.xlu0 %1163
        %1173 = vrot.lane.b32.xlu0 %v1125, 64
        %v1174 = vpop.permute.xlu0 %1173
        %1175 = vrot.lane.b32.xlu0 %v1126, 64
        %v1176 = vpop.permute.xlu0 %1175
        %1177 = vrot.lane.b32.xlu0 %v1127, 64
        %v1178 = vpop.permute.xlu0 %1177
        %1179 = vrot.lane.b32.xlu0 %v1128, 64
        %v1180 = vpop.permute.xlu0 %1179
        %1189 = vrot.lane.b32.xlu0 %v1149, 96
        %v1190 = vpop.permute.xlu0 %1189
        %1191 = vrot.lane.b32.xlu0 %v1150, 96
        %v1192 = vpop.permute.xlu0 %1191
        %1193 = vrot.lane.b32.xlu0 %v1151, 96
        %v1194 = vpop.permute.xlu0 %1193
        %1195 = vrot.lane.b32.xlu0 %v1152, 96
        %v1196 = vpop.permute.xlu0 %1195
        %v1201 = vsel %vm625, %v1077, %v1158
        %v1202 = vsel %vm625, %v1078, %v1160
        %v1203 = vsel %vm625, %v1079, %v1162
        %v1204 = vsel %vm625, %v1080, %v1164
        %v1205 = vsel %vm630, %v1201, %v1174
        %v1206 = vsel %vm630, %v1202, %v1176
        %v1207 = vsel %vm630, %v1203, %v1178
        %v1208 = vsel %vm630, %v1204, %v1180
        %v1209 = vsel %vm635, %v1205, %v1190
        %v1210 = vsel %vm635, %v1206, %v1192
        %v1211 = vsel %vm635, %v1207, %v1194
        %v1212 = vsel %vm635, %v1208, %v1196
        %vm1213 = vcmp.gt.f32.partialorder %v1209, 0.0
        %vm1214 = vcmp.gt.f32.partialorder %v1210, 0.0
        %vm1215 = vcmp.gt.f32.partialorder %v1211, 0.0
        %vm1216 = vcmp.gt.f32.partialorder %v1212, 0.0
        %v1217 = vmul.f32 %v1209, 0.2
        %v1218 = vmul.f32 %v1210, 0.2
        %v1219 = vmul.f32 %v1211, 0.2
        %v1220 = vmul.f32 %v1212, 0.2
        %v1221 = vsel %vm1213, %v1209, %v1217
        %v1222 = vsel %vm1214, %v1210, %v1218
        %v1223 = vsel %vm1215, %v1211, %v1219
        %v1224 = vsel %vm1216, %v1212, %v1220
        %v1225 = vadd.f32 %v1221, %v298
        %v1226 = vadd.f32 %v1222, %v299
        %v1227 = vadd.f32 %v1223, %v300
        %v1228 = vadd.f32 %v1224, %v301
        %1229 = vmax.xlane.f32.xlu0 %v1225
        %v1230 = vpop.xlane.xlu0 %1229
        %1231 = vmax.xlane.f32.xlu0 %v1226
        %v1232 = vpop.xlane.xlu0 %1231
        %1233 = vmax.xlane.f32.xlu0 %v1227
        %v1234 = vpop.xlane.xlu0 %1233
        %1235 = vmax.xlane.f32.xlu0 %v1228
        %v1236 = vpop.xlane.xlu0 %1235
        %v1237 = vsub.f32 %v1225, %v1230
        %v1238 = vsub.f32 %v1226, %v1232
        %v1239 = vsub.f32 %v1227, %v1234
        %v1240 = vsub.f32 %v1228, %v1236
        %v1241 = vmul.f32 %v1237, 1.442695
        %v1242 = vpow.pop %v1241
        %v1243 = vmul.f32 %v1238, 1.442695
        %v1244 = vpow.pop %v1243
        %v1245 = vmul.f32 %v1239, 1.442695
        %v1246 = vpow.pop %v1245
        %v1247 = vmul.f32 %v1240, 1.442695
        %v1248 = vpow.pop %v1247
        %v1249 = vpack.c.bf16 %v998, %v995
        %v1250 = vpack.c.bf16 %v1006, %v1003
        %v1253 = vunpack.c.l.b16 %v1249
        %v1254 = vunpack.c.h.b16 %v1249
        %v1255 = vunpack.c.l.b16 %v1250
        %v1256 = vunpack.c.h.b16 %v1250
        %v1257 = vpack.c.b16 %v1253, %v1253
        %v1258 = vpack.c.b16 %v1254, %v1254
        %v1259 = vpack.c.b16 %v1255, %v1255
        %v1260 = vpack.c.b16 %v1256, %v1256
        %1265 = vst.msk [vmem:[#allocation2] sm:$0xf] %vm692, %v1257
        %1266 = vst.msk [vmem:[#allocation2 + $0x4] sm:$0xf] %vm692, %v1258
        %1267 = vst.msk [vmem:[#allocation2 + $0x8] sm:$0xf] %vm692, %v1259
        %1268 = vst.msk [vmem:[#allocation2 + $0xc] sm:$0xf] %vm692, %v1260
        %1269 = vst.msk [vmem:[#allocation2 + $0x10] sm:$0xf] %vm697, %v1257
        %1270 = vst.msk [vmem:[#allocation2 + $0x14] sm:$0xf] %vm697, %v1258
        %1271 = vst.msk [vmem:[#allocation2 + $0x18] sm:$0xf] %vm697, %v1259
        %1272 = vst.msk [vmem:[#allocation2 + $0x1c] sm:$0xf] %vm697, %v1260
        %1273 = vst.msk [vmem:[#allocation2 + $0x20] sm:$0xf] %vm702, %v1257
        %1274 = vst.msk [vmem:[#allocation2 + $0x24] sm:$0xf] %vm702, %v1258
        %1275 = vst.msk [vmem:[#allocation2 + $0x28] sm:$0xf] %vm702, %v1259
        %1276 = vst.msk [vmem:[#allocation2 + $0x2c] sm:$0xf] %vm702, %v1260
        %1277 = vst.msk [vmem:[#allocation2 + $0x30] sm:$0xf] %vm707, %v1257
        %1278 = vst.msk [vmem:[#allocation2 + $0x34] sm:$0xf] %vm707, %v1258
        %1279 = vst.msk [vmem:[#allocation2 + $0x38] sm:$0xf] %vm707, %v1259
        %1280 = vst.msk [vmem:[#allocation2 + $0x3c] sm:$0xf] %vm707, %v1260
        %v1281 = vpack.c.bf16 %v1244, %v1242
        %v1282 = vpack.c.bf16 %v1248, %v1246
        %v1283 = vld [vmem:[#allocation2] sm:$0xf]
        %v1284 = vld [vmem:[#allocation2 + $0x4] sm:$0xf]
        %v1285 = vld [vmem:[#allocation2 + $0x8] sm:$0xf]
        %v1286 = vld [vmem:[#allocation2 + $0xc] sm:$0xf]
        %v1287 = vld [vmem:[#allocation2 + $0x10] sm:$0xf]
        %v1288 = vld [vmem:[#allocation2 + $0x14] sm:$0xf]
        %v1289 = vld [vmem:[#allocation2 + $0x18] sm:$0xf]
        %v1290 = vld [vmem:[#allocation2 + $0x1c] sm:$0xf]
        %v1291 = vld [vmem:[#allocation2 + $0x20] sm:$0xf]
        %v1292 = vld [vmem:[#allocation2 + $0x24] sm:$0xf]
        %v1293 = vld [vmem:[#allocation2 + $0x28] sm:$0xf]
        %v1294 = vld [vmem:[#allocation2 + $0x2c] sm:$0xf]
        %v1295 = vld [vmem:[#allocation2 + $0x30] sm:$0xf]
        %v1296 = vld [vmem:[#allocation2 + $0x34] sm:$0xf]
        %v1297 = vld [vmem:[#allocation2 + $0x38] sm:$0xf]
        %v1298 = vld [vmem:[#allocation2 + $0x3c] sm:$0xf]
        %v1315 = vunpack.c.l.b16 %v1283
        %v1316 = vunpack.c.l.b16 %v1284
        %v1317 = vunpack.c.l.b16 %v1285
        %v1318 = vunpack.c.l.b16 %v1286
        %v1319 = vunpack.c.l.b16 %v1287
        %v1320 = vunpack.c.l.b16 %v1288
        %v1321 = vunpack.c.l.b16 %v1289
        %v1322 = vunpack.c.l.b16 %v1290
        %v1323 = vunpack.c.l.b16 %v1291
        %v1324 = vunpack.c.l.b16 %v1292
        %v1325 = vunpack.c.l.b16 %v1293
        %v1326 = vunpack.c.l.b16 %v1294
        %v1327 = vunpack.c.l.b16 %v1295
        %v1328 = vunpack.c.l.b16 %v1296
        %v1329 = vunpack.c.l.b16 %v1297
        %v1330 = vunpack.c.l.b16 %v1298
        %v1331 = vpack.c.b16 %v1316, %v1315
        %v1332 = vpack.c.b16 %v1318, %v1317
        %v1333 = vpack.c.b16 %v1320, %v1319
        %v1334 = vpack.c.b16 %v1322, %v1321
        %v1335 = vpack.c.b16 %v1324, %v1323
        %v1336 = vpack.c.b16 %v1326, %v1325
        %v1337 = vpack.c.b16 %v1328, %v1327
        %v1338 = vpack.c.b16 %v1330, %v1329
        %1347 = vmatprep.subr.bf16.mxu0 0
        %1348 = vmatpush1.bf16.msra.mxu0 %v1338
        %1349 = vmatprep.subr.bf16.mxu0 0
        %1350 = vmatpush1.bf16.msra.mxu0 %v1337
        %1351 = vmatprep.subr.bf16.mxu0 0
        %1352 = vmatpush1.bf16.msra.mxu0 %v1336
        %1353 = vmatprep.subr.bf16.mxu0 0
        %1354 = vmatpush1.bf16.msra.mxu0 %v1335
        %1355 = vmatprep.subr.bf16.mxu0 0
        %1356 = vmatpush1.bf16.msra.mxu0 %v1334
        %1357 = vmatprep.subr.bf16.mxu0 0
        %1358 = vmatpush1.bf16.msra.mxu0 %v1333
        %1359 = vmatprep.subr.bf16.mxu0 0
        %1360 = vmatpush1.bf16.msra.mxu0 %v1332
        %1361 = vmatprep.subr.bf16.mxu0 0
        %1362 = vmatpush1.bf16.msra.mxu0 %v1331
        %1363 = vmatprep.subr.bf16.mxu0 0
        %1364 = vmatpush2.bf16.msra.mxu0 0
        %1365 = vmatprep.subr.bf16.mxu0 0
        %1366 = vmatpush2.bf16.msra.mxu0 0
        %1367 = vmatprep.subr.bf16.mxu0 0
        %1368 = vmatpush2.bf16.msra.mxu0 0
        %1369 = vmatprep.subr.bf16.mxu0 0
        %1370 = vmatpush2.bf16.msra.mxu0 0
        %1371 = vmatprep.subr.bf16.mxu0 0
        %1372 = vmatpush2.bf16.msra.mxu0 0
        %1373 = vmatprep.subr.bf16.mxu0 0
        %1374 = vmatpush2.bf16.msra.mxu0 0
        %1375 = vmatprep.subr.bf16.mxu0 0
        %1376 = vmatpush2.bf16.msra.mxu0 0
        %1377 = vmatprep.subr.bf16.mxu0 0
        %1378 = vmatpush2.bf16.msra.mxu0 0
        %1379 = vmatprep.mubr.bf16.mxu0 0
        %1380 = vmatmul.mubr.bf16.gmra.mxu0 %v1281
        %v1381 = vpop.f32.mrf.mxu0
        %v1382 = vadd.f32 0.0, %v1381
        %v1383 = vpop.f32.mrf.mxu0
        %v1384 = vpop.f32.mrf.mxu0
        %v1385 = vadd.f32 0.0, %v1384
        %v1386 = vpop.f32.mrf.mxu0
        %1387 = vmatprep.mubr.bf16.mxu0 0
        %1388 = vmatmul.mubr.bf16.gmra.mxu0 %v1282
        %v1389 = vpop.f32.mrf.mxu0
        %v1390 = vadd.f32 0.0, %v1389
        %v1391 = vpop.f32.mrf.mxu0
        %v1392 = vpop.f32.mrf.mxu0
        %v1393 = vadd.f32 0.0, %v1392
        %v1394 = vpop.f32.mrf.mxu0
        %1395 = vdwg.mxu0
        %v1396 = vrcp.pop %v1382
        %v1397 = vrcp.pop %v1385
        %v1398 = vrcp.pop %v1390
        %v1399 = vrcp.pop %v1393
        %1401 = vset.pattern.permute.xlu0 64
        %1402 = vperm.xlu0 %1401, %v1396
        %v1403 = vpop.permute.xlu0 %1402
        %1406 = vset.pattern.permute.xlu0 64
        %1407 = vperm.xlu0 %1406, %v1397
        %v1408 = vpop.permute.xlu0 %1407
        %1411 = vset.pattern.permute.xlu0 64
        %1412 = vperm.xlu0 %1411, %v1398
        %v1413 = vpop.permute.xlu0 %1412
        %1416 = vset.pattern.permute.xlu0 64
        %1417 = vperm.xlu0 %1416, %v1399
        %v1418 = vpop.permute.xlu0 %1417
        %1420 = vset.pattern.permute.xlu0 65
        %1421 = vperm.xlu0 %1420, %v1396
        %v1422 = vpop.permute.xlu0 %1421
        %1424 = vset.pattern.permute.xlu0 65
        %1425 = vperm.xlu0 %1424, %v1397
        %v1426 = vpop.permute.xlu0 %1425
        %1428 = vset.pattern.permute.xlu0 65
        %1429 = vperm.xlu0 %1428, %v1398
        %v1430 = vpop.permute.xlu0 %1429
        %1432 = vset.pattern.permute.xlu0 65
        %1433 = vperm.xlu0 %1432, %v1399
        %v1434 = vpop.permute.xlu0 %1433
        %1436 = vset.pattern.permute.xlu0 66
        %1437 = vperm.xlu0 %1436, %v1396
        %v1438 = vpop.permute.xlu0 %1437
        %1440 = vset.pattern.permute.xlu0 66
        %1441 = vperm.xlu0 %1440, %v1397
        %v1442 = vpop.permute.xlu0 %1441
        %1444 = vset.pattern.permute.xlu0 66
        %1445 = vperm.xlu0 %1444, %v1398
        %v1446 = vpop.permute.xlu0 %1445
        %1448 = vset.pattern.permute.xlu0 66
        %1449 = vperm.xlu0 %1448, %v1399
        %v1450 = vpop.permute.xlu0 %1449
        %1452 = vset.pattern.permute.xlu0 67
        %1453 = vperm.xlu0 %1452, %v1396
        %v1454 = vpop.permute.xlu0 %1453
        %1456 = vset.pattern.permute.xlu0 67
        %1457 = vperm.xlu0 %1456, %v1397
        %v1458 = vpop.permute.xlu0 %1457
        %1460 = vset.pattern.permute.xlu0 67
        %1461 = vperm.xlu0 %1460, %v1398
        %v1462 = vpop.permute.xlu0 %1461
        %1464 = vset.pattern.permute.xlu0 67
        %1465 = vperm.xlu0 %1464, %v1399
        %v1466 = vpop.permute.xlu0 %1465
        %v1468 = vsel %vm377, %v1403, %v1422
        %v1469 = vsel %vm377, %v1408, %v1426
        %v1470 = vsel %vm377, %v1413, %v1430
        %v1471 = vsel %vm377, %v1418, %v1434
        %v1472 = vsel %vm625, %v1468, %v1438
        %v1473 = vsel %vm625, %v1469, %v1442
        %v1474 = vsel %vm625, %v1470, %v1446
        %v1475 = vsel %vm625, %v1471, %v1450
        %v1476 = vsel %vm907, %v1472, %v1454
        %v1477 = vsel %vm907, %v1473, %v1458
        %v1478 = vsel %vm907, %v1474, %v1462
        %v1479 = vsel %vm907, %v1475, %v1466
        %v1480 = vmul.f32 %v1382, %v1476
        %v1481 = vmul.f32 %v1385, %v1477
        %v1482 = vmul.f32 %v1390, %v1478
        %v1483 = vmul.f32 %v1393, %v1479
        %v1484 = vlaneseq
        %v1485 = vshrl.u32 %v1484, 7
        %v1486 = vsub.s32 0, %v1485
        %v1487 = vrot.slane %v322, %v1486
        %v1488 = vadd.f32 %v1480, %v1487
        %v1489 = vadd.f32 %v1481, %v1487
        %v1490 = vadd.f32 %v1482, %v1487
        %v1491 = vadd.f32 %v1483, %v1487
        %v1492 = vpack.c.bf16 %v1489, %v1488
        %v1493 = vpack.c.bf16 %v1491, %v1490
        %v1495 = vsel %vm625, %v302, 0
        %1497 = vmatprep.subr.bf16.mxu0 0
        %1498 = vmatpush1.bf16.msra.mxu0 0
        %1499 = vmatprep.subr.bf16.mxu0 0
        %1500 = vmatpush1.bf16.msra.mxu0 0
        %1501 = vmatprep.subr.bf16.mxu0 0
        %1502 = vmatpush1.bf16.msra.mxu0 0
        %1503 = vmatprep.subr.bf16.mxu0 0
        %1504 = vmatpush1.bf16.msra.mxu0 0
        %1505 = vmatprep.subr.bf16.mxu0 0
        %1506 = vmatpush1.bf16.msra.mxu0 0
        %1507 = vmatprep.subr.bf16.mxu0 0
        %1508 = vmatpush1.bf16.msra.mxu0 0
        %1509 = vmatprep.subr.bf16.mxu0 0
        %1510 = vmatpush1.bf16.msra.mxu0 %v1493
        %1511 = vmatprep.subr.bf16.mxu0 0
        %1512 = vmatpush1.bf16.msra.mxu0 %v1492
        %1513 = vmatprep.subr.bf16.mxu0 0
        %1514 = vmatpush2.bf16.msra.mxu0 0
        %1515 = vmatprep.subr.bf16.mxu0 0
        %1516 = vmatpush2.bf16.msra.mxu0 0
        %1517 = vmatprep.subr.bf16.mxu0 0
        %1518 = vmatpush2.bf16.msra.mxu0 0
        %1519 = vmatprep.subr.bf16.mxu0 0
        %1520 = vmatpush2.bf16.msra.mxu0 0
        %1521 = vmatprep.subr.bf16.mxu0 0
        %1522 = vmatpush2.bf16.msra.mxu0 0
        %1523 = vmatprep.subr.bf16.mxu0 0
        %1524 = vmatpush2.bf16.msra.mxu0 0
        %1525 = vmatprep.subr.bf16.mxu0 0
        %1526 = vmatpush2.bf16.msra.mxu0 0
        %1527 = vmatprep.subr.bf16.mxu0 0
        %1528 = vmatpush2.bf16.msra.mxu0 0
        %1529 = vmatprep.mubr.bf16.mxu0 0
        %1530 = vmatmul.mubr.bf16.gmra.mxu0 %v1495
        %v1531 = vpop.f32.mrf.mxu0
        %v1532 = vadd.f32 0.0, %v1531
        %v1533 = vpop.f32.mrf.mxu0
        %v1534 = vpop.f32.mrf.mxu0
        %v1535 = vpop.f32.mrf.mxu0
        %1536 = vdwg.mxu0
        %v1537 = vpack.c.bf16 %v1532, %v1532
        %v1538 = vlaneseq
        %v1539 = vshrl.u32 %v1538, 7
        %v1540 = vsub.s32 0, %v1539
        %v1541 = vrot.slane %v323, %v1540
        %v1550 = vunpack.c.l.b16 %v313
        %v1551 = vunpack.c.l.b16 %v314
        %v1552 = vunpack.c.l.b16 %v315
        %v1553 = vunpack.c.l.b16 %v316
        %v1554 = vunpack.c.l.b16 %v317
        %v1555 = vunpack.c.l.b16 %v318
        %v1556 = vunpack.c.l.b16 %v319
        %v1557 = vunpack.c.l.b16 %v320
        %v1558 = vpack.c.b16 %v1551, %v1550
        %v1559 = vpack.c.b16 %v1553, %v1552
        %v1560 = vpack.c.b16 %v1555, %v1554
        %v1561 = vpack.c.b16 %v1557, %v1556
        %v1567 = vsel %vm630, %v1537, 0
        %1569 = vmatprep.subr.bf16.mxu0 0
        %1570 = vmatpush1.bf16.msra.mxu0 0
        %1571 = vmatprep.subr.bf16.mxu0 0
        %1572 = vmatpush1.bf16.msra.mxu0 0
        %1573 = vmatprep.subr.bf16.mxu0 0
        %1574 = vmatpush1.bf16.msra.mxu0 0
        %1575 = vmatprep.subr.bf16.mxu0 0
        %1576 = vmatpush1.bf16.msra.mxu0 0
        %1577 = vmatprep.subr.bf16.mxu0 0
        %1578 = vmatpush1.bf16.msra.mxu0 %v1561
        %1579 = vmatprep.subr.bf16.mxu0 0
        %1580 = vmatpush1.bf16.msra.mxu0 %v1560
        %1581 = vmatprep.subr.bf16.mxu0 0
        %1582 = vmatpush1.bf16.msra.mxu0 %v1559
        %1583 = vmatprep.subr.bf16.mxu0 0
        %1584 = vmatpush1.bf16.msra.mxu0 %v1558
        %1585 = vmatprep.subr.bf16.mxu0 0
        %1586 = vmatpush2.bf16.msra.mxu0 0
        %1587 = vmatprep.subr.bf16.mxu0 0
        %1588 = vmatpush2.bf16.msra.mxu0 0
        %1589 = vmatprep.subr.bf16.mxu0 0
        %1590 = vmatpush2.bf16.msra.mxu0 0
        %1591 = vmatprep.subr.bf16.mxu0 0
        %1592 = vmatpush2.bf16.msra.mxu0 0
        %1593 = vmatprep.subr.bf16.mxu0 0
        %1594 = vmatpush2.bf16.msra.mxu0 0
        %1595 = vmatprep.subr.bf16.mxu0 0
        %1596 = vmatpush2.bf16.msra.mxu0 0
        %1597 = vmatprep.subr.bf16.mxu0 0
        %1598 = vmatpush2.bf16.msra.mxu0 0
        %1599 = vmatprep.subr.bf16.mxu0 0
        %1600 = vmatpush2.bf16.msra.mxu0 0
        %1601 = vmatprep.mubr.bf16.mxu0 0
        %1602 = vmatmul.mubr.bf16.gmra.mxu0 %v1567
        %v1603 = vpop.f32.mrf.mxu0
        %v1604 = vadd.f32 %v1541, %v1603
        %v1605 = vpop.f32.mrf.mxu0
        %v1606 = vpop.f32.mrf.mxu0
        %v1607 = vpop.f32.mrf.mxu0
        %1608 = vdwg.mxu0
        %vm1609 = vcmask 58368
        %v1610 = vsel %vm1609, %v1604, -inf
        %1611 = vmax.xlane.f32.xlu0 %v1610
        %v1612 = vpop.xlane.xlu0 %1611
        %v1613 = vsub.f32 %v1604, %v1612
        %v1614 = vmul.f32 %v1613, 1.442695
        %v1615 = vpow.pop %v1614
        %v1616 = vsel %vm1609, %v1615, 0.0
        %1617 = vadd.xlane.f32.xlu0 %v1616
        %v1618 = vpop.xlane.xlu0 %1617
        %v1619 = vlog2.pop %v1618
        %v1620 = vmul.f32 %v1619, 0.6931472
        %v1621 = vsub.f32 %v1613, %v1620
        %1622 = vst.msk [vmem:[%s283] sm:$0x3] %vm1609, %v1621
        %s1623 = sand.u32 %s151, 1
        %s1624 = scalar_lea.sflag [#allocation5], %s1623
        %s1625 = sand.u32 %s151, 1
        %s1626 = smul.addr %s1625, 2
        %s1627 = scalar_lea.vmem [#allocation8], %s1626
        // Predicated region
        $region49: #{tpu_custom_call.1} parent=39 // pred_check
          %p1628 = pneg %p161
        $region50: #{tpu_custom_call.1} parent=39 // pred_check_branch
          %1630 = sbr.rel (%p1628) target = $region52
        $region51: #{tpu_custom_call.1} parent=39 // pred_region
          %s1632 = ssub.s32 32, 32
          %1633 = vsyncadd %s1624, %s1632
          %s1634 = smul.addr %s23, 32
          %s1635 = scalar_lea.hbm %s5, %s1634
          %s1637 = sshll.u32 %s1627, 4
          %s1638 = int_to_ptr.vmem [resolvable:$true] %s1637
          %1640 = dma.vmem_to_hbm [thread:$0]  %s1638, 32, %s1635, %s1624
        $region52: #{tpu_custom_call.1} parent=39 // pred_fallthru
          _
      $region40: #{tpu_custom_call.1} parent=5 // pred_fallthru
        _
      %p1641 = scmp.le.s32.totalorder 2, %s18
      // Predicated region
      $region53: #{tpu_custom_call.1} parent=5 // pred_check
        %p1642 = pneg %p1641
      $region54: #{tpu_custom_call.1} parent=5 // pred_check_branch
        %1644 = sbr.rel (%p1642) target = $region56
      $region55: #{tpu_custom_call.1} parent=5 // pred_region
        %s1645 = ssub.s32 %s18, 2
        // Predicated region
        $region57: #{tpu_custom_call.1} parent=55 // pred_check
          %p1646 = pneg %p167
        $region58: #{tpu_custom_call.1} parent=55 // pred_check_branch
          %1648 = sbr.rel (%p1646) target = $region60
        $region59: #{tpu_custom_call.1} parent=55 // pred_region
          %s1649 = sand.u32 %s152, 1
          %s1650 = scalar_lea.sflag [#allocation5], %s1649
          %s1651 = sand.u32 %s152, 1
          %s1652 = smul.addr %s1651, 2
          %s1653 = scalar_lea.vmem [#allocation8], %s1652
          %1654 = dma.done %s1650, 32
        $region60: #{tpu_custom_call.1} parent=55 // pred_fallthru
          _
      $region56: #{tpu_custom_call.1} parent=5 // pred_fallthru
        _
    $region6: #{tpu_custom_call.1} parent=1 // loop_footer
      %s22 = sadd.s32 1, %s18
    $region7: #{tpu_custom_call.1} parent=1 // loop_footer_branch
      %17 = sbr.rel target = $region3
    $region8: #{tpu_custom_call.1} parent=1 // loop_exit
      _
    %1655 = vsyncpa [#allocation4], 1
    %s1656 = scalar_lea.sflag [#allocation4], 1
    %1657 = vsyncpa %s1656, 1
    %1658 = vsyncpa [#allocation7], 1
    %1659 = vsyncpa [#allocation5], 1
    %s1660 = scalar_lea.sflag [#allocation5], 1
    %1661 = vsyncpa %s1660, 1

</llo_original>
